<compile_context>
chip_gen: v6e
topology: v6e:2x2x1
jax: 0.10.0
libtpu: 0.0.40
codegen_flags: <defaults>
</compile_context>

<pallas_src>
import functools

import jax
import jax.numpy as jnp
from jax.experimental import pallas as pl
from jax.experimental.pallas import tpu as pltpu


def _capsule_routing_kernel(x_ref, w_ref, out_ref, *, num_capsules,
                            out_channels, num_iterations):
    """All capsules at once, for one batch block.

    x_ref:   (R, Bb, IC)     -- inputs, route-node axis leading
    w_ref:   (R, IC, C*OC)   -- routing weights, capsules flattened into lanes
    out_ref: (Bb, C*OC)      -- lane-dense output slab
    """
    C, OC = num_capsules, out_channels
    x = x_ref[...]
    w = w_ref[...]
    R = x.shape[0]

    # priors[r, b, c*OC + o] = sum_i x[r, b, i] * w[r, i, c*OC + o]
    #   == PyTorch (x[None,:,:,None,:] @ route_weights[:,None,:,:,:])[c,b,r,0,o]
    # NOTE(v6e/v7x): at real CapsNet sizes cast x/w to bf16 here (keep the f32
    # accumulator) for ~3x MXU throughput; at IC=8 (v5e) a VPU multiply-add
    # formulation is equally fine -- the contraction is tiny either way.
    priors = jnp.einsum("rbi,rik->rbk", x, w,
                        preferred_element_type=jnp.float32)         # (R, Bb, K)

    # Segment helpers over the flattened capsule*OC lane axis (exact f32,
    # no extra matmul rounding, layout stays lane-dense throughout).
    def seg_sum(t):    # (..., C*OC) -> (..., C): sum each capsule's OC block
        return jnp.concatenate(
            [jnp.sum(t[..., c * OC:(c + 1) * OC], axis=-1, keepdims=True)
             for c in range(C)], axis=-1)

    def seg_bcast(t):  # (..., C) -> (..., C*OC): repeat each capsule OC times
        return jnp.concatenate(
            [jnp.broadcast_to(t[..., c:c + 1], t.shape[:-1] + (OC,))
             for c in range(C)], axis=-1)

    def squash(s):     # squash over OC inside each capsule segment
        sq = seg_sum(s * s)                                         # (Bb, C)
        # sq/(1+sq) * s / sqrt(sq)  ==  s * sqrt(sq)/(1+sq)
        scale = jnp.sqrt(sq) * pl.reciprocal(1.0 + sq, approx=True)
        return s * seg_bcast(scale)                                 # (Bb, K)

    # Routing logits: one scalar per (route node, batch, capsule).
    logits = jnp.zeros((R, x.shape[1], C), jnp.float32)

    out = None
    for i in range(num_iterations):
        if i == 0:
            # softmax of all-zero logits over the route-node axis == 1/R.
            s = jnp.sum(priors, axis=0) * (1.0 / R)                 # (Bb, K)
        else:
            m = jnp.max(logits, axis=0, keepdims=True)
            e = jnp.exp(logits - m)
            inv_denom = pl.reciprocal(jnp.sum(e, axis=0, keepdims=True),
                                      approx=True)
            probs = e * inv_denom                                   # (R, Bb, C)
            s = jnp.sum(seg_bcast(probs) * priors, axis=0)          # (Bb, K)
        out = squash(s)
        if i != num_iterations - 1:
            delta = seg_sum(priors * out[None])                     # (R, Bb, C)
            logits = logits + delta

    out_ref[...] = out.astype(out_ref.dtype)


def capsule_layer_forward(x, route_weights, num_iterations, *, block_b=None):
    """x: (B, R, IC) f32, route_weights: (C, R, IC, OC) f32.

    Returns (C, B, 1, 1, OC) f32, matching the PyTorch forward.
    """
    B, R, IC = x.shape
    C, R2, IC2, OC = route_weights.shape
    assert (R, IC) == (R2, IC2)
    K = C * OC

    if block_b is None:
        block_b = B            # single grid step at small sizes
    assert B % block_b == 0

    # Wrapper-side layout glue (plain JAX):
    x_rbi = jnp.transpose(x, (1, 0, 2))                             # (R, B, IC)
    w_flat = jnp.transpose(route_weights, (1, 2, 0, 3)).reshape(R, IC, K)

    kernel = functools.partial(_capsule_routing_kernel,
                               num_capsules=C, out_channels=OC,
                               num_iterations=num_iterations)

    # Grid over independent batch blocks -> "parallel" (shards across the two
    # TensorCores on v7x; no-op on v5e/v6e).  For real CapsNet sizes
    # (R~1152, B~128) choose block_b so priors (R*block_b*C*OC*4 B) fits
    # comfortably in VMEM (64 MiB per TC on v7x).
    out_flat = pl.pallas_call(
        kernel,
        out_shape=jax.ShapeDtypeStruct((B, K), jnp.float32),
        grid=(pl.cdiv(B, block_b),),
        in_specs=[
            pl.BlockSpec((R, block_b, IC), lambda b: (0, b, 0)),
            pl.BlockSpec((R, IC, K), lambda b: (0, 0, 0)),  # shared; not re-fetched
        ],
        out_specs=pl.BlockSpec((block_b, K), lambda b: (b, 0)),
        compiler_params=pltpu.CompilerParams(
            dimension_semantics=("parallel",)),
    )(x_rbi, w_flat)

    # (B, C*OC) -> (C, B, 1, 1, OC), matching PyTorch.
    return out_flat.reshape(B, C, OC).transpose(1, 0, 2).reshape(C, B, 1, 1, OC)


def _reference_forward(x, route_weights, num_iterations):
    """Pure-JAX transcription of the PyTorch routing branch."""
    priors = jnp.einsum("bri,crio->cbro", x, route_weights,
                        precision=jax.lax.Precision.HIGHEST)
    priors = priors[:, :, :, None, :]                    # (C,B,R,1,OC)
    logits = jnp.zeros_like(priors)
    outputs = None
    for i in range(num_iterations):
        probs = jax.nn.softmax(logits, axis=2)
        s = jnp.sum(probs * priors, axis=2, keepdims=True)
        sq = jnp.sum(s * s, axis=-1, keepdims=True)
        outputs = (sq / (1.0 + sq)) * s / jnp.sqrt(sq)
        if i != num_iterations - 1:
            delta = jnp.sum(priors * outputs, axis=-1, keepdims=True)
            logits = logits + delta
    return outputs                                       # (C,B,1,1,OC)


if __name__ == "__main__":
    # Module config (small, consistent with CapsuleLayer(num_route_nodes != -1)):
    num_capsules = 4       # C
    num_route_nodes = 8    # R
    in_channels = 8        # IC
    out_channels = 16      # OC
    num_iterations = 3
    batch = 2              # B    (C*B*OC = 128 -> output slab is lane-dense)

    key = jax.random.PRNGKey(0)
    k_x, k_w = jax.random.split(key)
    x = jax.random.normal(k_x, (batch, num_route_nodes, in_channels),
                          dtype=jnp.float32)
    # torch.randn-style deterministic parameter init:
    route_weights = jax.random.normal(
        k_w, (num_capsules, num_route_nodes, in_channels, out_channels),
        dtype=jnp.float32)

    out = capsule_layer_forward(x, route_weights, num_iterations)
    out = jax.block_until_ready(out)

    ref = _reference_forward(x, route_weights, num_iterations)
    assert out.shape == (num_capsules, batch, 1, 1, out_channels), out.shape
    assert jnp.allclose(out, ref, rtol=1e-2, atol=1e-2), \
        float(jnp.max(jnp.abs(out - ref)))

    print("KERNEL_OK")
</pallas_src>

<mosaic_0001>
module attributes {stable_mosaic.version = 11 : i64} {
  func.func @_capsule_routing_kernel(%arg0: i32, %arg1: memref<8x2x8xf32, #tpu.memory_space<vmem>>, %arg2: memref<8x8x64xf32, #tpu.memory_space<vmem>>, %arg3: memref<2x64xf32, #tpu.memory_space<vmem>>) attributes {dimension_semantics = [#tpu.dimension_semantics<parallel>], iteration_bounds = array<i64: 1>, scalar_prefetch = 0 : i64, scratch_operands = 0 : i64, tpu.core_type = #tpu.core_type<tc>, window_params = [{transform_indices = @transform_0, window_bounds = array<i64: 8, 2, 8>}, {pipeline_mode = #tpu.pipeline_mode<synchronous>, transform_indices = @transform_1, window_bounds = array<i64: 8, 8, 64>}, {transform_indices = @transform_2, window_bounds = array<i64: 2, 64>}]} {
    %c0 = arith.constant 0 : index
    %c0_0 = arith.constant 0 : index
    %c0_1 = arith.constant 0 : index
    %0 = vector.load %arg1[%c0, %c0_0, %c0_1] : memref<8x2x8xf32, #tpu.memory_space<vmem>>, vector<8x2x8xf32>
    %c0_2 = arith.constant 0 : index
    %c0_3 = arith.constant 0 : index
    %c0_4 = arith.constant 0 : index
    %1 = vector.load %arg2[%c0_2, %c0_3, %c0_4] : memref<8x8x64xf32, #tpu.memory_space<vmem>>, vector<8x8x64xf32>
    "tpu.trace_start"() <{level = 10 : i32, message = "rbi,rik->rbk"}> : () -> ()
    %cst = arith.constant dense<0.000000e+00> : vector<8x2x64xf32>
    %2 = tpu.matmul %0, %1, %cst {dimension_numbers = #tpu.dot_dimension_numbers<[2], [1], [1], [2], [0, 0, 0, 1, 1, 2], [0], [0]>} : vector<8x2x8xf32>, vector<8x8x64xf32>, vector<8x2x64xf32> -> vector<8x2x64xf32>
    %cst_5 = arith.constant 0.000000e+00 : f32
    "tpu.trace_stop"() : () -> ()
    %3 = vector.broadcast %cst_5 : f32 to vector<8x2x4xf32>
    %cst_6 = arith.constant dense<0.000000e+00> : vector<2x64xf32>
    %4 = vector.multi_reduction <add>, %2, %cst_6 [0] : vector<8x2x64xf32> to vector<2x64xf32>
    %cst_7 = arith.constant 1.250000e-01 : f32
    %5 = vector.broadcast %cst_7 : f32 to vector<2x64xf32>
    %6 = arith.mulf %4, %5 : vector<2x64xf32>
    %7 = arith.mulf %6, %6 : vector<2x64xf32>
    %8 = vector.extract_strided_slice %7 {offsets = [0, 0], sizes = [2, 16], strides = [1, 1]} : vector<2x64xf32> to vector<2x16xf32>
    %cst_8 = arith.constant dense<0.000000e+00> : vector<2xf32>
    %9 = vector.multi_reduction <add>, %8, %cst_8 [1] : vector<2x16xf32> to vector<2xf32>
    %10 = vector.shape_cast %9 : vector<2xf32> to vector<2x1xf32>
    %11 = vector.extract_strided_slice %7 {offsets = [0, 16], sizes = [2, 16], strides = [1, 1]} : vector<2x64xf32> to vector<2x16xf32>
    %cst_9 = arith.constant dense<0.000000e+00> : vector<2xf32>
    %12 = vector.multi_reduction <add>, %11, %cst_9 [1] : vector<2x16xf32> to vector<2xf32>
    %13 = vector.shape_cast %12 : vector<2xf32> to vector<2x1xf32>
    %14 = vector.extract_strided_slice %7 {offsets = [0, 32], sizes = [2, 16], strides = [1, 1]} : vector<2x64xf32> to vector<2x16xf32>
    %cst_10 = arith.constant dense<0.000000e+00> : vector<2xf32>
    %15 = vector.multi_reduction <add>, %14, %cst_10 [1] : vector<2x16xf32> to vector<2xf32>
    %16 = vector.shape_cast %15 : vector<2xf32> to vector<2x1xf32>
    %17 = vector.extract_strided_slice %7 {offsets = [0, 48], sizes = [2, 16], strides = [1, 1]} : vector<2x64xf32> to vector<2x16xf32>
    %cst_11 = arith.constant dense<0.000000e+00> : vector<2xf32>
    %18 = vector.multi_reduction <add>, %17, %cst_11 [1] : vector<2x16xf32> to vector<2xf32>
    %19 = vector.shape_cast %18 : vector<2xf32> to vector<2x1xf32>
    %20 = tpu.concatenate %10, %13, %16, %19 in 1 : vector<2x1xf32>, vector<2x1xf32>, vector<2x1xf32>, vector<2x1xf32> -> vector<2x4xf32>
    %21 = math.sqrt %20 : vector<2x4xf32>
    %cst_12 = arith.constant 1.000000e+00 : f32
    %22 = vector.broadcast %cst_12 : f32 to vector<2x4xf32>
    %23 = arith.addf %22, %20 : vector<2x4xf32>
    %24 = tpu.reciprocal %23 {approx = true} : vector<2x4xf32> -> vector<2x4xf32>
    %25 = arith.mulf %21, %24 : vector<2x4xf32>
    %26 = vector.extract_strided_slice %25 {offsets = [0, 0], sizes = [2, 1], strides = [1, 1]} : vector<2x4xf32> to vector<2x1xf32>
    %27 = vector.shape_cast %26 : vector<2x1xf32> to vector<2x1xf32>
    %28 = vector.broadcast %27 : vector<2x1xf32> to vector<2x16xf32>
    %29 = vector.extract_strided_slice %25 {offsets = [0, 1], sizes = [2, 1], strides = [1, 1]} : vector<2x4xf32> to vector<2x1xf32>
    %30 = vector.shape_cast %29 : vector<2x1xf32> to vector<2x1xf32>
    %31 = vector.broadcast %30 : vector<2x1xf32> to vector<2x16xf32>
    %32 = vector.extract_strided_slice %25 {offsets = [0, 2], sizes = [2, 1], strides = [1, 1]} : vector<2x4xf32> to vector<2x1xf32>
    %33 = vector.shape_cast %32 : vector<2x1xf32> to vector<2x1xf32>
    %34 = vector.broadcast %33 : vector<2x1xf32> to vector<2x16xf32>
    %35 = vector.extract_strided_slice %25 {offsets = [0, 3], sizes = [2, 1], strides = [1, 1]} : vector<2x4xf32> to vector<2x1xf32>
    %36 = vector.shape_cast %35 : vector<2x1xf32> to vector<2x1xf32>
    %37 = vector.broadcast %36 : vector<2x1xf32> to vector<2x16xf32>
    %38 = tpu.concatenate %28, %31, %34, %37 in 1 : vector<2x16xf32>, vector<2x16xf32>, vector<2x16xf32>, vector<2x16xf32> -> vector<2x64xf32>
    %39 = arith.mulf %6, %38 : vector<2x64xf32>
    %40 = vector.shape_cast %39 : vector<2x64xf32> to vector<1x2x64xf32>
    %41 = vector.broadcast %40 : vector<1x2x64xf32> to vector<8x2x64xf32>
    %42 = arith.mulf %2, %41 : vector<8x2x64xf32>
    %43 = vector.extract_strided_slice %42 {offsets = [0, 0, 0], sizes = [8, 2, 16], strides = [1, 1, 1]} : vector<8x2x64xf32> to vector<8x2x16xf32>
    %cst_13 = arith.constant dense<0.000000e+00> : vector<8x2xf32>
    %44 = vector.multi_reduction <add>, %43, %cst_13 [2] : vector<8x2x16xf32> to vector<8x2xf32>
    %45 = vector.shape_cast %44 : vector<8x2xf32> to vector<8x2x1xf32>
    %46 = vector.extract_strided_slice %42 {offsets = [0, 0, 16], sizes = [8, 2, 16], strides = [1, 1, 1]} : vector<8x2x64xf32> to vector<8x2x16xf32>
    %cst_14 = arith.constant dense<0.000000e+00> : vector<8x2xf32>
    %47 = vector.multi_reduction <add>, %46, %cst_14 [2] : vector<8x2x16xf32> to vector<8x2xf32>
    %48 = vector.shape_cast %47 : vector<8x2xf32> to vector<8x2x1xf32>
    %49 = vector.extract_strided_slice %42 {offsets = [0, 0, 32], sizes = [8, 2, 16], strides = [1, 1, 1]} : vector<8x2x64xf32> to vector<8x2x16xf32>
    %cst_15 = arith.constant dense<0.000000e+00> : vector<8x2xf32>
    %50 = vector.multi_reduction <add>, %49, %cst_15 [2] : vector<8x2x16xf32> to vector<8x2xf32>
    %51 = vector.shape_cast %50 : vector<8x2xf32> to vector<8x2x1xf32>
    %52 = vector.extract_strided_slice %42 {offsets = [0, 0, 48], sizes = [8, 2, 16], strides = [1, 1, 1]} : vector<8x2x64xf32> to vector<8x2x16xf32>
    %cst_16 = arith.constant dense<0.000000e+00> : vector<8x2xf32>
    %53 = vector.multi_reduction <add>, %52, %cst_16 [2] : vector<8x2x16xf32> to vector<8x2xf32>
    %54 = vector.shape_cast %53 : vector<8x2xf32> to vector<8x2x1xf32>
    %55 = tpu.concatenate %45, %48, %51, %54 in 2 : vector<8x2x1xf32>, vector<8x2x1xf32>, vector<8x2x1xf32>, vector<8x2x1xf32> -> vector<8x2x4xf32>
    %56 = arith.addf %3, %55 : vector<8x2x4xf32>
    %cst_17 = arith.constant dense<0xFF800000> : vector<2x4xf32>
    %57 = vector.multi_reduction <maximumf>, %56, %cst_17 [0] : vector<8x2x4xf32> to vector<2x4xf32>
    %58 = vector.shape_cast %57 : vector<2x4xf32> to vector<1x2x4xf32>
    %59 = vector.broadcast %58 : vector<1x2x4xf32> to vector<8x2x4xf32>
    %60 = arith.subf %56, %59 : vector<8x2x4xf32>
    %61 = math.exp %60 : vector<8x2x4xf32>
    %cst_18 = arith.constant dense<0.000000e+00> : vector<2x4xf32>
    %62 = vector.multi_reduction <add>, %61, %cst_18 [0] : vector<8x2x4xf32> to vector<2x4xf32>
    %63 = vector.shape_cast %62 : vector<2x4xf32> to vector<1x2x4xf32>
    %64 = tpu.reciprocal %63 {approx = true} : vector<1x2x4xf32> -> vector<1x2x4xf32>
    %65 = vector.broadcast %64 : vector<1x2x4xf32> to vector<8x2x4xf32>
    %66 = arith.mulf %61, %65 : vector<8x2x4xf32>
    %67 = vector.extract_strided_slice %66 {offsets = [0, 0, 0], sizes = [8, 2, 1], strides = [1, 1, 1]} : vector<8x2x4xf32> to vector<8x2x1xf32>
    %68 = vector.shape_cast %67 : vector<8x2x1xf32> to vector<8x2x1xf32>
    %69 = vector.broadcast %68 : vector<8x2x1xf32> to vector<8x2x16xf32>
    %70 = vector.extract_strided_slice %66 {offsets = [0, 0, 1], sizes = [8, 2, 1], strides = [1, 1, 1]} : vector<8x2x4xf32> to vector<8x2x1xf32>
    %71 = vector.shape_cast %70 : vector<8x2x1xf32> to vector<8x2x1xf32>
    %72 = vector.broadcast %71 : vector<8x2x1xf32> to vector<8x2x16xf32>
    %73 = vector.extract_strided_slice %66 {offsets = [0, 0, 2], sizes = [8, 2, 1], strides = [1, 1, 1]} : vector<8x2x4xf32> to vector<8x2x1xf32>
    %74 = vector.shape_cast %73 : vector<8x2x1xf32> to vector<8x2x1xf32>
    %75 = vector.broadcast %74 : vector<8x2x1xf32> to vector<8x2x16xf32>
    %76 = vector.extract_strided_slice %66 {offsets = [0, 0, 3], sizes = [8, 2, 1], strides = [1, 1, 1]} : vector<8x2x4xf32> to vector<8x2x1xf32>
    %77 = vector.shape_cast %76 : vector<8x2x1xf32> to vector<8x2x1xf32>
    %78 = vector.broadcast %77 : vector<8x2x1xf32> to vector<8x2x16xf32>
    %79 = tpu.concatenate %69, %72, %75, %78 in 2 : vector<8x2x16xf32>, vector<8x2x16xf32>, vector<8x2x16xf32>, vector<8x2x16xf32> -> vector<8x2x64xf32>
    %80 = arith.mulf %79, %2 : vector<8x2x64xf32>
    %cst_19 = arith.constant dense<0.000000e+00> : vector<2x64xf32>
    %81 = vector.multi_reduction <add>, %80, %cst_19 [0] : vector<8x2x64xf32> to vector<2x64xf32>
    %82 = arith.mulf %81, %81 : vector<2x64xf32>
    %83 = vector.extract_strided_slice %82 {offsets = [0, 0], sizes = [2, 16], strides = [1, 1]} : vector<2x64xf32> to vector<2x16xf32>
    %cst_20 = arith.constant dense<0.000000e+00> : vector<2xf32>
    %84 = vector.multi_reduction <add>, %83, %cst_20 [1] : vector<2x16xf32> to vector<2xf32>
    %85 = vector.shape_cast %84 : vector<2xf32> to vector<2x1xf32>
    %86 = vector.extract_strided_slice %82 {offsets = [0, 16], sizes = [2, 16], strides = [1, 1]} : vector<2x64xf32> to vector<2x16xf32>
    %cst_21 = arith.constant dense<0.000000e+00> : vector<2xf32>
    %87 = vector.multi_reduction <add>, %86, %cst_21 [1] : vector<2x16xf32> to vector<2xf32>
    %88 = vector.shape_cast %87 : vector<2xf32> to vector<2x1xf32>
    %89 = vector.extract_strided_slice %82 {offsets = [0, 32], sizes = [2, 16], strides = [1, 1]} : vector<2x64xf32> to vector<2x16xf32>
    %cst_22 = arith.constant dense<0.000000e+00> : vector<2xf32>
    %90 = vector.multi_reduction <add>, %89, %cst_22 [1] : vector<2x16xf32> to vector<2xf32>
    %91 = vector.shape_cast %90 : vector<2xf32> to vector<2x1xf32>
    %92 = vector.extract_strided_slice %82 {offsets = [0, 48], sizes = [2, 16], strides = [1, 1]} : vector<2x64xf32> to vector<2x16xf32>
    %cst_23 = arith.constant dense<0.000000e+00> : vector<2xf32>
    %93 = vector.multi_reduction <add>, %92, %cst_23 [1] : vector<2x16xf32> to vector<2xf32>
    %94 = vector.shape_cast %93 : vector<2xf32> to vector<2x1xf32>
    %95 = tpu.concatenate %85, %88, %91, %94 in 1 : vector<2x1xf32>, vector<2x1xf32>, vector<2x1xf32>, vector<2x1xf32> -> vector<2x4xf32>
    %96 = math.sqrt %95 : vector<2x4xf32>
    %cst_24 = arith.constant 1.000000e+00 : f32
    %97 = vector.broadcast %cst_24 : f32 to vector<2x4xf32>
    %98 = arith.addf %97, %95 : vector<2x4xf32>
    %99 = tpu.reciprocal %98 {approx = true} : vector<2x4xf32> -> vector<2x4xf32>
    %100 = arith.mulf %96, %99 : vector<2x4xf32>
    %101 = vector.extract_strided_slice %100 {offsets = [0, 0], sizes = [2, 1], strides = [1, 1]} : vector<2x4xf32> to vector<2x1xf32>
    %102 = vector.shape_cast %101 : vector<2x1xf32> to vector<2x1xf32>
    %103 = vector.broadcast %102 : vector<2x1xf32> to vector<2x16xf32>
    %104 = vector.extract_strided_slice %100 {offsets = [0, 1], sizes = [2, 1], strides = [1, 1]} : vector<2x4xf32> to vector<2x1xf32>
    %105 = vector.shape_cast %104 : vector<2x1xf32> to vector<2x1xf32>
    %106 = vector.broadcast %105 : vector<2x1xf32> to vector<2x16xf32>
    %107 = vector.extract_strided_slice %100 {offsets = [0, 2], sizes = [2, 1], strides = [1, 1]} : vector<2x4xf32> to vector<2x1xf32>
    %108 = vector.shape_cast %107 : vector<2x1xf32> to vector<2x1xf32>
    %109 = vector.broadcast %108 : vector<2x1xf32> to vector<2x16xf32>
    %110 = vector.extract_strided_slice %100 {offsets = [0, 3], sizes = [2, 1], strides = [1, 1]} : vector<2x4xf32> to vector<2x1xf32>
    %111 = vector.shape_cast %110 : vector<2x1xf32> to vector<2x1xf32>
    %112 = vector.broadcast %111 : vector<2x1xf32> to vector<2x16xf32>
    %113 = tpu.concatenate %103, %106, %109, %112 in 1 : vector<2x16xf32>, vector<2x16xf32>, vector<2x16xf32>, vector<2x16xf32> -> vector<2x64xf32>
    %114 = arith.mulf %81, %113 : vector<2x64xf32>
    %115 = vector.shape_cast %114 : vector<2x64xf32> to vector<1x2x64xf32>
    %116 = vector.broadcast %115 : vector<1x2x64xf32> to vector<8x2x64xf32>
    %117 = arith.mulf %2, %116 : vector<8x2x64xf32>
    %118 = vector.extract_strided_slice %117 {offsets = [0, 0, 0], sizes = [8, 2, 16], strides = [1, 1, 1]} : vector<8x2x64xf32> to vector<8x2x16xf32>
    %cst_25 = arith.constant dense<0.000000e+00> : vector<8x2xf32>
    %119 = vector.multi_reduction <add>, %118, %cst_25 [2] : vector<8x2x16xf32> to vector<8x2xf32>
    %120 = vector.shape_cast %119 : vector<8x2xf32> to vector<8x2x1xf32>
    %121 = vector.extract_strided_slice %117 {offsets = [0, 0, 16], sizes = [8, 2, 16], strides = [1, 1, 1]} : vector<8x2x64xf32> to vector<8x2x16xf32>
    %cst_26 = arith.constant dense<0.000000e+00> : vector<8x2xf32>
    %122 = vector.multi_reduction <add>, %121, %cst_26 [2] : vector<8x2x16xf32> to vector<8x2xf32>
    %123 = vector.shape_cast %122 : vector<8x2xf32> to vector<8x2x1xf32>
    %124 = vector.extract_strided_slice %117 {offsets = [0, 0, 32], sizes = [8, 2, 16], strides = [1, 1, 1]} : vector<8x2x64xf32> to vector<8x2x16xf32>
    %cst_27 = arith.constant dense<0.000000e+00> : vector<8x2xf32>
    %125 = vector.multi_reduction <add>, %124, %cst_27 [2] : vector<8x2x16xf32> to vector<8x2xf32>
    %126 = vector.shape_cast %125 : vector<8x2xf32> to vector<8x2x1xf32>
    %127 = vector.extract_strided_slice %117 {offsets = [0, 0, 48], sizes = [8, 2, 16], strides = [1, 1, 1]} : vector<8x2x64xf32> to vector<8x2x16xf32>
    %cst_28 = arith.constant dense<0.000000e+00> : vector<8x2xf32>
    %128 = vector.multi_reduction <add>, %127, %cst_28 [2] : vector<8x2x16xf32> to vector<8x2xf32>
    %129 = vector.shape_cast %128 : vector<8x2xf32> to vector<8x2x1xf32>
    %130 = tpu.concatenate %120, %123, %126, %129 in 2 : vector<8x2x1xf32>, vector<8x2x1xf32>, vector<8x2x1xf32>, vector<8x2x1xf32> -> vector<8x2x4xf32>
    %131 = arith.addf %56, %130 : vector<8x2x4xf32>
    %cst_29 = arith.constant dense<0xFF800000> : vector<2x4xf32>
    %132 = vector.multi_reduction <maximumf>, %131, %cst_29 [0] : vector<8x2x4xf32> to vector<2x4xf32>
    %133 = vector.shape_cast %132 : vector<2x4xf32> to vector<1x2x4xf32>
    %134 = vector.broadcast %133 : vector<1x2x4xf32> to vector<8x2x4xf32>
    %135 = arith.subf %131, %134 : vector<8x2x4xf32>
    %136 = math.exp %135 : vector<8x2x4xf32>
    %cst_30 = arith.constant dense<0.000000e+00> : vector<2x4xf32>
    %137 = vector.multi_reduction <add>, %136, %cst_30 [0] : vector<8x2x4xf32> to vector<2x4xf32>
    %138 = vector.shape_cast %137 : vector<2x4xf32> to vector<1x2x4xf32>
    %139 = tpu.reciprocal %138 {approx = true} : vector<1x2x4xf32> -> vector<1x2x4xf32>
    %140 = vector.broadcast %139 : vector<1x2x4xf32> to vector<8x2x4xf32>
    %141 = arith.mulf %136, %140 : vector<8x2x4xf32>
    %142 = vector.extract_strided_slice %141 {offsets = [0, 0, 0], sizes = [8, 2, 1], strides = [1, 1, 1]} : vector<8x2x4xf32> to vector<8x2x1xf32>
    %143 = vector.shape_cast %142 : vector<8x2x1xf32> to vector<8x2x1xf32>
    %144 = vector.broadcast %143 : vector<8x2x1xf32> to vector<8x2x16xf32>
    %145 = vector.extract_strided_slice %141 {offsets = [0, 0, 1], sizes = [8, 2, 1], strides = [1, 1, 1]} : vector<8x2x4xf32> to vector<8x2x1xf32>
    %146 = vector.shape_cast %145 : vector<8x2x1xf32> to vector<8x2x1xf32>
    %147 = vector.broadcast %146 : vector<8x2x1xf32> to vector<8x2x16xf32>
    %148 = vector.extract_strided_slice %141 {offsets = [0, 0, 2], sizes = [8, 2, 1], strides = [1, 1, 1]} : vector<8x2x4xf32> to vector<8x2x1xf32>
    %149 = vector.shape_cast %148 : vector<8x2x1xf32> to vector<8x2x1xf32>
    %150 = vector.broadcast %149 : vector<8x2x1xf32> to vector<8x2x16xf32>
    %151 = vector.extract_strided_slice %141 {offsets = [0, 0, 3], sizes = [8, 2, 1], strides = [1, 1, 1]} : vector<8x2x4xf32> to vector<8x2x1xf32>
    %152 = vector.shape_cast %151 : vector<8x2x1xf32> to vector<8x2x1xf32>
    %153 = vector.broadcast %152 : vector<8x2x1xf32> to vector<8x2x16xf32>
    %154 = tpu.concatenate %144, %147, %150, %153 in 2 : vector<8x2x16xf32>, vector<8x2x16xf32>, vector<8x2x16xf32>, vector<8x2x16xf32> -> vector<8x2x64xf32>
    %155 = arith.mulf %154, %2 : vector<8x2x64xf32>
    %cst_31 = arith.constant dense<0.000000e+00> : vector<2x64xf32>
    %156 = vector.multi_reduction <add>, %155, %cst_31 [0] : vector<8x2x64xf32> to vector<2x64xf32>
    %157 = arith.mulf %156, %156 : vector<2x64xf32>
    %158 = vector.extract_strided_slice %157 {offsets = [0, 0], sizes = [2, 16], strides = [1, 1]} : vector<2x64xf32> to vector<2x16xf32>
    %cst_32 = arith.constant dense<0.000000e+00> : vector<2xf32>
    %159 = vector.multi_reduction <add>, %158, %cst_32 [1] : vector<2x16xf32> to vector<2xf32>
    %160 = vector.shape_cast %159 : vector<2xf32> to vector<2x1xf32>
    %161 = vector.extract_strided_slice %157 {offsets = [0, 16], sizes = [2, 16], strides = [1, 1]} : vector<2x64xf32> to vector<2x16xf32>
    %cst_33 = arith.constant dense<0.000000e+00> : vector<2xf32>
    %162 = vector.multi_reduction <add>, %161, %cst_33 [1] : vector<2x16xf32> to vector<2xf32>
    %163 = vector.shape_cast %162 : vector<2xf32> to vector<2x1xf32>
    %164 = vector.extract_strided_slice %157 {offsets = [0, 32], sizes = [2, 16], strides = [1, 1]} : vector<2x64xf32> to vector<2x16xf32>
    %cst_34 = arith.constant dense<0.000000e+00> : vector<2xf32>
    %165 = vector.multi_reduction <add>, %164, %cst_34 [1] : vector<2x16xf32> to vector<2xf32>
    %166 = vector.shape_cast %165 : vector<2xf32> to vector<2x1xf32>
    %167 = vector.extract_strided_slice %157 {offsets = [0, 48], sizes = [2, 16], strides = [1, 1]} : vector<2x64xf32> to vector<2x16xf32>
    %cst_35 = arith.constant dense<0.000000e+00> : vector<2xf32>
    %168 = vector.multi_reduction <add>, %167, %cst_35 [1] : vector<2x16xf32> to vector<2xf32>
    %169 = vector.shape_cast %168 : vector<2xf32> to vector<2x1xf32>
    %170 = tpu.concatenate %160, %163, %166, %169 in 1 : vector<2x1xf32>, vector<2x1xf32>, vector<2x1xf32>, vector<2x1xf32> -> vector<2x4xf32>
    %171 = math.sqrt %170 : vector<2x4xf32>
    %cst_36 = arith.constant 1.000000e+00 : f32
    %172 = vector.broadcast %cst_36 : f32 to vector<2x4xf32>
    %173 = arith.addf %172, %170 : vector<2x4xf32>
    %174 = tpu.reciprocal %173 {approx = true} : vector<2x4xf32> -> vector<2x4xf32>
    %175 = arith.mulf %171, %174 : vector<2x4xf32>
    %176 = vector.extract_strided_slice %175 {offsets = [0, 0], sizes = [2, 1], strides = [1, 1]} : vector<2x4xf32> to vector<2x1xf32>
    %177 = vector.shape_cast %176 : vector<2x1xf32> to vector<2x1xf32>
    %178 = vector.broadcast %177 : vector<2x1xf32> to vector<2x16xf32>
    %179 = vector.extract_strided_slice %175 {offsets = [0, 1], sizes = [2, 1], strides = [1, 1]} : vector<2x4xf32> to vector<2x1xf32>
    %180 = vector.shape_cast %179 : vector<2x1xf32> to vector<2x1xf32>
    %181 = vector.broadcast %180 : vector<2x1xf32> to vector<2x16xf32>
    %182 = vector.extract_strided_slice %175 {offsets = [0, 2], sizes = [2, 1], strides = [1, 1]} : vector<2x4xf32> to vector<2x1xf32>
    %183 = vector.shape_cast %182 : vector<2x1xf32> to vector<2x1xf32>
    %184 = vector.broadcast %183 : vector<2x1xf32> to vector<2x16xf32>
    %185 = vector.extract_strided_slice %175 {offsets = [0, 3], sizes = [2, 1], strides = [1, 1]} : vector<2x4xf32> to vector<2x1xf32>
    %186 = vector.shape_cast %185 : vector<2x1xf32> to vector<2x1xf32>
    %187 = vector.broadcast %186 : vector<2x1xf32> to vector<2x16xf32>
    %188 = tpu.concatenate %178, %181, %184, %187 in 1 : vector<2x16xf32>, vector<2x16xf32>, vector<2x16xf32>, vector<2x16xf32> -> vector<2x64xf32>
    %189 = arith.mulf %156, %188 : vector<2x64xf32>
    %c0_37 = arith.constant 0 : index
    %c0_38 = arith.constant 0 : index
    %190 = vector.load %arg3[%c0_37, %c0_38] : memref<2x64xf32, #tpu.memory_space<vmem>>, vector<2x64xf32>
    tpu.vector_store %arg3[%c0_37, %c0_38], %189 {strides = array<i32>} : memref<2x64xf32, #tpu.memory_space<vmem>>, vector<2x64xf32>,
    return
  }
  func.func @transform_0(%arg0: i32) -> (i32, i32, i32) {
    %c0_i32 = arith.constant 0 : i32
    %c0_i32_0 = arith.constant 0 : i32
    %c0_i32_1 = arith.constant 0 : i32
    return %c0_i32, %arg0, %c0_i32_0 : i32, i32, i32
  }
  func.func @transform_1(%arg0: i32) -> (i32, i32, i32) {
    %c0_i32 = arith.constant 0 : i32
    %c0_i32_0 = arith.constant 0 : i32
    %c0_i32_1 = arith.constant 0 : i32
    %c0_i32_2 = arith.constant 0 : i32
    return %c0_i32, %c0_i32_0, %c0_i32_1 : i32, i32, i32
  }
  func.func @transform_2(%arg0: i32) -> (i32, i32) {
    %c0_i32 = arith.constant 0 : i32
    %c0_i32_0 = arith.constant 0 : i32
    return %arg0, %c0_i32 : i32, i32
  }
}

</mosaic_0001>

<llo_original>
// kernel: tpu_custom_call.1
$region0: #{tpu_custom_call.1}
  #allocation0 [shape = 'u32[]', space=smem, size = 0x4, offset = 0x4, fixed_abs, tag = 'smem constant byte address 0x4 - core index']
  #allocation1 [shape = 'u32[144,128]{1,0:T(1,128)}', space=vmem, size = 0x12000, scoped, tag = 'internal scratch']
  %s0 = inlined_call_operand.hbm [shape: f32[8,2,8], index: 0, kind: input, shape index: {}]
  %s1 = inlined_call_operand.hbm [shape: f32[8,8,64], index: 1, kind: input, shape index: {}]
  %s2 = inlined_call_operand.hbm [shape: f32[2,64], index: 2, kind: output, shape index: {}]
  %s3 = sld [smem:[#allocation0]]
  $region26: #{tpu_custom_call.1} parent=0
    _
  %s5 = ssub.s32 1, %s3
  %s6 = scalar_select 0, %s5, %s3
  $region1: #{tpu_custom_call.1} parent=0
    #allocation2 [shape = 'u8[8192]{0}', space=vmem, size = 0x2000, scoped, tag = 'input window, operand 0, single buffered']
    #allocation3 [shape = 's32[1]{0}', space=sflag, size = 0x4, scoped, tag = 'scoped memory for tpu_custom_call.1']
    #allocation4 [shape = 's32[1]{0}', space=sflag, size = 0x4, scoped, tag = 'scoped memory for tpu_custom_call.1']
    #allocation5 [shape = 'u8[32768]{0}', space=vmem, size = 0x8000, scoped, tag = 'input window, operand 1, single buffered']
    #allocation6 [shape = 's32[1]{0}', space=sflag, size = 0x4, scoped, tag = 'scoped memory for tpu_custom_call.1']
    #allocation7 [shape = 'u8[1024]{0}', space=vmem, size = 0x400, scoped, tag = 'output window, operand 0, single buffered']
    %7 = vsyncpa [#allocation3], 0
    %8 = vsyncpa [#allocation6], 0
    %9 = vsyncpa [#allocation4], 0
    // Predicated region
    $region2: #{tpu_custom_call.1} parent=1 // pred_check
      _
    $region3: #{tpu_custom_call.1} parent=1 // pred_check_branch
      %11 = sbr.rel (0) target = $region5
    $region4: #{tpu_custom_call.1} parent=1 // pred_region
      %s13 = ssub.s32 256, 256
      %14 = vsyncadd [#allocation3], %s13
      %s15 = sshll.u32 [#allocation2], 4
      %s16 = int_to_ptr.vmem [resolvable:$true] %s15
      %21 = dma.hbm_to_vmem [thread:$0]  %s0, 256, %s16, [#allocation3], 32, 32, 2
    $region5: #{tpu_custom_call.1} parent=1 // pred_fallthru
      _
    // Predicated region
    $region6: #{tpu_custom_call.1} parent=1 // pred_check
      _
    $region7: #{tpu_custom_call.1} parent=1 // pred_check_branch
      %23 = sbr.rel (0) target = $region9
    $region8: #{tpu_custom_call.1} parent=1 // pred_region
      %s25 = ssub.s32 1024, 1024
      %26 = vsyncadd [#allocation6], %s25
      %s27 = sshll.u32 [#allocation5], 4
      %s28 = int_to_ptr.vmem [resolvable:$true] %s27
      %33 = dma.hbm_to_vmem [thread:$0]  %s1, 1024, %s28, [#allocation6], 128, 128, 8
    $region9: #{tpu_custom_call.1} parent=1 // pred_fallthru
      _
    // Predicated region
    $region10: #{tpu_custom_call.1} parent=1 // pred_check
      _
    $region11: #{tpu_custom_call.1} parent=1 // pred_check_branch
      %35 = sbr.rel (0) target = $region13
    $region12: #{tpu_custom_call.1} parent=1 // pred_region
      %36 = dma.done [#allocation3], 256
    $region13: #{tpu_custom_call.1} parent=1 // pred_fallthru
      _
    // Predicated region
    $region14: #{tpu_custom_call.1} parent=1 // pred_check
      _
    $region15: #{tpu_custom_call.1} parent=1 // pred_check_branch
      %38 = sbr.rel (0) target = $region17
    $region16: #{tpu_custom_call.1} parent=1 // pred_region
      %39 = dma.done [#allocation6], 1024
    $region17: #{tpu_custom_call.1} parent=1 // pred_fallthru
      _
    %v40 = vld [vmem:[#allocation2] sm:$0x3]
    %v41 = vld [vmem:[#allocation2 + $0x2] sm:$0x3]
    %v42 = vld [vmem:[#allocation2 + $0x4] sm:$0x3]
    %v43 = vld [vmem:[#allocation2 + $0x6] sm:$0x3]
    %v44 = vld [vmem:[#allocation2 + $0x8] sm:$0x3]
    %v45 = vld [vmem:[#allocation2 + $0xa] sm:$0x3]
    %v46 = vld [vmem:[#allocation2 + $0xc] sm:$0x3]
    %v47 = vld [vmem:[#allocation2 + $0xe] sm:$0x3]
    %v48 = vld [vmem:[#allocation5] sm:$0xff]
    %v49 = vld [vmem:[#allocation5 + $0x8] sm:$0xff]
    %v50 = vld [vmem:[#allocation5 + $0x10] sm:$0xff]
    %v51 = vld [vmem:[#allocation5 + $0x18] sm:$0xff]
    %v52 = vld [vmem:[#allocation5 + $0x20] sm:$0xff]
    %v53 = vld [vmem:[#allocation5 + $0x28] sm:$0xff]
    %v54 = vld [vmem:[#allocation5 + $0x30] sm:$0xff]
    %v55 = vld [vmem:[#allocation5 + $0x38] sm:$0xff]
    %vm56 = vcmask 64512
    %v58 = vsel %vm56, %v40, 0
    %60 = vmatprep.subr.mxu0 0.0
    %61 = vmatpush1.msra.mxu0 0.0
    %62 = vmatprep.subr.mxu0 0.0
    %63 = vmatpush1.msra.mxu0 0.0
    %64 = vmatprep.subr.mxu0 0.0
    %65 = vmatpush1.msra.mxu0 0.0
    %66 = vmatprep.subr.mxu0 0.0
    %67 = vmatpush1.msra.mxu0 0.0
    %68 = vmatprep.subr.mxu0 0.0
    %69 = vmatpush1.msra.mxu0 0.0
    %70 = vmatprep.subr.mxu0 0.0
    %71 = vmatpush1.msra.mxu0 0.0
    %72 = vmatprep.subr.mxu0 0.0
    %73 = vmatpush1.msra.mxu0 0.0
    %74 = vmatprep.subr.mxu0 0.0
    %75 = vmatpush1.msra.mxu0 0.0
    %76 = vmatprep.subr.mxu0 0.0
    %77 = vmatpush1.msra.mxu0 0.0
    %78 = vmatprep.subr.mxu0 0.0
    %79 = vmatpush1.msra.mxu0 0.0
    %80 = vmatprep.subr.mxu0 0.0
    %81 = vmatpush1.msra.mxu0 0.0
    %82 = vmatprep.subr.mxu0 0.0
    %83 = vmatpush1.msra.mxu0 0.0
    %84 = vmatprep.subr.mxu0 0.0
    %85 = vmatpush1.msra.mxu0 0.0
    %86 = vmatprep.subr.mxu0 0.0
    %87 = vmatpush1.msra.mxu0 0.0
    %88 = vmatprep.subr.mxu0 0.0
    %89 = vmatpush1.msra.mxu0 0.0
    %90 = vmatprep.subr.mxu0 0.0
    %91 = vmatpush1.msra.mxu0 %v48
    %92 = vmatprep.subr.mxu0 0.0
    %93 = vmatpush2.msra.mxu0 0.0
    %94 = vmatprep.subr.mxu0 0.0
    %95 = vmatpush2.msra.mxu0 0.0
    %96 = vmatprep.subr.mxu0 0.0
    %97 = vmatpush2.msra.mxu0 0.0
    %98 = vmatprep.subr.mxu0 0.0
    %99 = vmatpush2.msra.mxu0 0.0
    %100 = vmatprep.subr.mxu0 0.0
    %101 = vmatpush2.msra.mxu0 0.0
    %102 = vmatprep.subr.mxu0 0.0
    %103 = vmatpush2.msra.mxu0 0.0
    %104 = vmatprep.subr.mxu0 0.0
    %105 = vmatpush2.msra.mxu0 0.0
    %106 = vmatprep.subr.mxu0 0.0
    %107 = vmatpush2.msra.mxu0 0.0
    %108 = vmatprep.subr.mxu0 0.0
    %109 = vmatpush2.msra.mxu0 0.0
    %110 = vmatprep.subr.mxu0 0.0
    %111 = vmatpush2.msra.mxu0 0.0
    %112 = vmatprep.subr.mxu0 0.0
    %113 = vmatpush2.msra.mxu0 0.0
    %114 = vmatprep.subr.mxu0 0.0
    %115 = vmatpush2.msra.mxu0 0.0
    %116 = vmatprep.subr.mxu0 0.0
    %117 = vmatpush2.msra.mxu0 0.0
    %118 = vmatprep.subr.mxu0 0.0
    %119 = vmatpush2.msra.mxu0 0.0
    %120 = vmatprep.subr.mxu0 0.0
    %121 = vmatpush2.msra.mxu0 0.0
    %122 = vmatprep.subr.mxu0 0.0
    %123 = vmatpush2.msra.mxu0 0.0
    %124 = vmatprep.mubr.f32.mxu0 0.0
    %125 = vmatmul.mubr.f32.gmra.mxu0 %v58
    %v126 = vpop.f32.mrf.mxu0
    %v127 = vadd.f32 0.0, %v126
    %v128 = vpop.f32.mrf.mxu0
    %129 = vdwg.mxu0
    %v131 = vsel %vm56, %v41, 0
    %133 = vmatprep.subr.mxu0 0.0
    %134 = vmatpush1.msra.mxu0 0.0
    %135 = vmatprep.subr.mxu0 0.0
    %136 = vmatpush1.msra.mxu0 0.0
    %137 = vmatprep.subr.mxu0 0.0
    %138 = vmatpush1.msra.mxu0 0.0
    %139 = vmatprep.subr.mxu0 0.0
    %140 = vmatpush1.msra.mxu0 0.0
    %141 = vmatprep.subr.mxu0 0.0
    %142 = vmatpush1.msra.mxu0 0.0
    %143 = vmatprep.subr.mxu0 0.0
    %144 = vmatpush1.msra.mxu0 0.0
    %145 = vmatprep.subr.mxu0 0.0
    %146 = vmatpush1.msra.mxu0 0.0
    %147 = vmatprep.subr.mxu0 0.0
    %148 = vmatpush1.msra.mxu0 0.0
    %149 = vmatprep.subr.mxu0 0.0
    %150 = vmatpush1.msra.mxu0 0.0
    %151 = vmatprep.subr.mxu0 0.0
    %152 = vmatpush1.msra.mxu0 0.0
    %153 = vmatprep.subr.mxu0 0.0
    %154 = vmatpush1.msra.mxu0 0.0
    %155 = vmatprep.subr.mxu0 0.0
    %156 = vmatpush1.msra.mxu0 0.0
    %157 = vmatprep.subr.mxu0 0.0
    %158 = vmatpush1.msra.mxu0 0.0
    %159 = vmatprep.subr.mxu0 0.0
    %160 = vmatpush1.msra.mxu0 0.0
    %161 = vmatprep.subr.mxu0 0.0
    %162 = vmatpush1.msra.mxu0 0.0
    %163 = vmatprep.subr.mxu0 0.0
    %164 = vmatpush1.msra.mxu0 %v49
    %165 = vmatprep.subr.mxu0 0.0
    %166 = vmatpush2.msra.mxu0 0.0
    %167 = vmatprep.subr.mxu0 0.0
    %168 = vmatpush2.msra.mxu0 0.0
    %169 = vmatprep.subr.mxu0 0.0
    %170 = vmatpush2.msra.mxu0 0.0
    %171 = vmatprep.subr.mxu0 0.0
    %172 = vmatpush2.msra.mxu0 0.0
    %173 = vmatprep.subr.mxu0 0.0
    %174 = vmatpush2.msra.mxu0 0.0
    %175 = vmatprep.subr.mxu0 0.0
    %176 = vmatpush2.msra.mxu0 0.0
    %177 = vmatprep.subr.mxu0 0.0
    %178 = vmatpush2.msra.mxu0 0.0
    %179 = vmatprep.subr.mxu0 0.0
    %180 = vmatpush2.msra.mxu0 0.0
    %181 = vmatprep.subr.mxu0 0.0
    %182 = vmatpush2.msra.mxu0 0.0
    %183 = vmatprep.subr.mxu0 0.0
    %184 = vmatpush2.msra.mxu0 0.0
    %185 = vmatprep.subr.mxu0 0.0
    %186 = vmatpush2.msra.mxu0 0.0
    %187 = vmatprep.subr.mxu0 0.0
    %188 = vmatpush2.msra.mxu0 0.0
    %189 = vmatprep.subr.mxu0 0.0
    %190 = vmatpush2.msra.mxu0 0.0
    %191 = vmatprep.subr.mxu0 0.0
    %192 = vmatpush2.msra.mxu0 0.0
    %193 = vmatprep.subr.mxu0 0.0
    %194 = vmatpush2.msra.mxu0 0.0
    %195 = vmatprep.subr.mxu0 0.0
    %196 = vmatpush2.msra.mxu0 0.0
    %197 = vmatprep.mubr.f32.mxu0 0.0
    %198 = vmatmul.mubr.f32.gmra.mxu0 %v131
    %v199 = vpop.f32.mrf.mxu0
    %v200 = vadd.f32 0.0, %v199
    %v201 = vpop.f32.mrf.mxu0
    %202 = vdwg.mxu0
    %v204 = vsel %vm56, %v42, 0
    %206 = vmatprep.subr.mxu0 0.0
    %207 = vmatpush1.msra.mxu0 0.0
    %208 = vmatprep.subr.mxu0 0.0
    %209 = vmatpush1.msra.mxu0 0.0
    %210 = vmatprep.subr.mxu0 0.0
    %211 = vmatpush1.msra.mxu0 0.0
    %212 = vmatprep.subr.mxu0 0.0
    %213 = vmatpush1.msra.mxu0 0.0
    %214 = vmatprep.subr.mxu0 0.0
    %215 = vmatpush1.msra.mxu0 0.0
    %216 = vmatprep.subr.mxu0 0.0
    %217 = vmatpush1.msra.mxu0 0.0
    %218 = vmatprep.subr.mxu0 0.0
    %219 = vmatpush1.msra.mxu0 0.0
    %220 = vmatprep.subr.mxu0 0.0
    %221 = vmatpush1.msra.mxu0 0.0
    %222 = vmatprep.subr.mxu0 0.0
    %223 = vmatpush1.msra.mxu0 0.0
    %224 = vmatprep.subr.mxu0 0.0
    %225 = vmatpush1.msra.mxu0 0.0
    %226 = vmatprep.subr.mxu0 0.0
    %227 = vmatpush1.msra.mxu0 0.0
    %228 = vmatprep.subr.mxu0 0.0
    %229 = vmatpush1.msra.mxu0 0.0
    %230 = vmatprep.subr.mxu0 0.0
    %231 = vmatpush1.msra.mxu0 0.0
    %232 = vmatprep.subr.mxu0 0.0
    %233 = vmatpush1.msra.mxu0 0.0
    %234 = vmatprep.subr.mxu0 0.0
    %235 = vmatpush1.msra.mxu0 0.0
    %236 = vmatprep.subr.mxu0 0.0
    %237 = vmatpush1.msra.mxu0 %v50
    %238 = vmatprep.subr.mxu0 0.0
    %239 = vmatpush2.msra.mxu0 0.0
    %240 = vmatprep.subr.mxu0 0.0
    %241 = vmatpush2.msra.mxu0 0.0
    %242 = vmatprep.subr.mxu0 0.0
    %243 = vmatpush2.msra.mxu0 0.0
    %244 = vmatprep.subr.mxu0 0.0
    %245 = vmatpush2.msra.mxu0 0.0
    %246 = vmatprep.subr.mxu0 0.0
    %247 = vmatpush2.msra.mxu0 0.0
    %248 = vmatprep.subr.mxu0 0.0
    %249 = vmatpush2.msra.mxu0 0.0
    %250 = vmatprep.subr.mxu0 0.0
    %251 = vmatpush2.msra.mxu0 0.0
    %252 = vmatprep.subr.mxu0 0.0
    %253 = vmatpush2.msra.mxu0 0.0
    %254 = vmatprep.subr.mxu0 0.0
    %255 = vmatpush2.msra.mxu0 0.0
    %256 = vmatprep.subr.mxu0 0.0
    %257 = vmatpush2.msra.mxu0 0.0
    %258 = vmatprep.subr.mxu0 0.0
    %259 = vmatpush2.msra.mxu0 0.0
    %260 = vmatprep.subr.mxu0 0.0
    %261 = vmatpush2.msra.mxu0 0.0
    %262 = vmatprep.subr.mxu0 0.0
    %263 = vmatpush2.msra.mxu0 0.0
    %264 = vmatprep.subr.mxu0 0.0
    %265 = vmatpush2.msra.mxu0 0.0
    %266 = vmatprep.subr.mxu0 0.0
    %267 = vmatpush2.msra.mxu0 0.0
    %268 = vmatprep.subr.mxu0 0.0
    %269 = vmatpush2.msra.mxu0 0.0
    %270 = vmatprep.mubr.f32.mxu0 0.0
    %271 = vmatmul.mubr.f32.gmra.mxu0 %v204
    %v272 = vpop.f32.mrf.mxu0
    %v273 = vadd.f32 0.0, %v272
    %v274 = vpop.f32.mrf.mxu0
    %275 = vdwg.mxu0
    %v277 = vsel %vm56, %v43, 0
    %279 = vmatprep.subr.mxu0 0.0
    %280 = vmatpush1.msra.mxu0 0.0
    %281 = vmatprep.subr.mxu0 0.0
    %282 = vmatpush1.msra.mxu0 0.0
    %283 = vmatprep.subr.mxu0 0.0
    %284 = vmatpush1.msra.mxu0 0.0
    %285 = vmatprep.subr.mxu0 0.0
    %286 = vmatpush1.msra.mxu0 0.0
    %287 = vmatprep.subr.mxu0 0.0
    %288 = vmatpush1.msra.mxu0 0.0
    %289 = vmatprep.subr.mxu0 0.0
    %290 = vmatpush1.msra.mxu0 0.0
    %291 = vmatprep.subr.mxu0 0.0
    %292 = vmatpush1.msra.mxu0 0.0
    %293 = vmatprep.subr.mxu0 0.0
    %294 = vmatpush1.msra.mxu0 0.0
    %295 = vmatprep.subr.mxu0 0.0
    %296 = vmatpush1.msra.mxu0 0.0
    %297 = vmatprep.subr.mxu0 0.0
    %298 = vmatpush1.msra.mxu0 0.0
    %299 = vmatprep.subr.mxu0 0.0
    %300 = vmatpush1.msra.mxu0 0.0
    %301 = vmatprep.subr.mxu0 0.0
    %302 = vmatpush1.msra.mxu0 0.0
    %303 = vmatprep.subr.mxu0 0.0
    %304 = vmatpush1.msra.mxu0 0.0
    %305 = vmatprep.subr.mxu0 0.0
    %306 = vmatpush1.msra.mxu0 0.0
    %307 = vmatprep.subr.mxu0 0.0
    %308 = vmatpush1.msra.mxu0 0.0
    %309 = vmatprep.subr.mxu0 0.0
    %310 = vmatpush1.msra.mxu0 %v51
    %311 = vmatprep.subr.mxu0 0.0
    %312 = vmatpush2.msra.mxu0 0.0
    %313 = vmatprep.subr.mxu0 0.0
    %314 = vmatpush2.msra.mxu0 0.0
    %315 = vmatprep.subr.mxu0 0.0
    %316 = vmatpush2.msra.mxu0 0.0
    %317 = vmatprep.subr.mxu0 0.0
    %318 = vmatpush2.msra.mxu0 0.0
    %319 = vmatprep.subr.mxu0 0.0
    %320 = vmatpush2.msra.mxu0 0.0
    %321 = vmatprep.subr.mxu0 0.0
    %322 = vmatpush2.msra.mxu0 0.0
    %323 = vmatprep.subr.mxu0 0.0
    %324 = vmatpush2.msra.mxu0 0.0
    %325 = vmatprep.subr.mxu0 0.0
    %326 = vmatpush2.msra.mxu0 0.0
    %327 = vmatprep.subr.mxu0 0.0
    %328 = vmatpush2.msra.mxu0 0.0
    %329 = vmatprep.subr.mxu0 0.0
    %330 = vmatpush2.msra.mxu0 0.0
    %331 = vmatprep.subr.mxu0 0.0
    %332 = vmatpush2.msra.mxu0 0.0
    %333 = vmatprep.subr.mxu0 0.0
    %334 = vmatpush2.msra.mxu0 0.0
    %335 = vmatprep.subr.mxu0 0.0
    %336 = vmatpush2.msra.mxu0 0.0
    %337 = vmatprep.subr.mxu0 0.0
    %338 = vmatpush2.msra.mxu0 0.0
    %339 = vmatprep.subr.mxu0 0.0
    %340 = vmatpush2.msra.mxu0 0.0
    %341 = vmatprep.subr.mxu0 0.0
    %342 = vmatpush2.msra.mxu0 0.0
    %343 = vmatprep.mubr.f32.mxu0 0.0
    %344 = vmatmul.mubr.f32.gmra.mxu0 %v277
    %v345 = vpop.f32.mrf.mxu0
    %v346 = vadd.f32 0.0, %v345
    %v347 = vpop.f32.mrf.mxu0
    %348 = vdwg.mxu0
    %v350 = vsel %vm56, %v44, 0
    %352 = vmatprep.subr.mxu0 0.0
    %353 = vmatpush1.msra.mxu0 0.0
    %354 = vmatprep.subr.mxu0 0.0
    %355 = vmatpush1.msra.mxu0 0.0
    %356 = vmatprep.subr.mxu0 0.0
    %357 = vmatpush1.msra.mxu0 0.0
    %358 = vmatprep.subr.mxu0 0.0
    %359 = vmatpush1.msra.mxu0 0.0
    %360 = vmatprep.subr.mxu0 0.0
    %361 = vmatpush1.msra.mxu0 0.0
    %362 = vmatprep.subr.mxu0 0.0
    %363 = vmatpush1.msra.mxu0 0.0
    %364 = vmatprep.subr.mxu0 0.0
    %365 = vmatpush1.msra.mxu0 0.0
    %366 = vmatprep.subr.mxu0 0.0
    %367 = vmatpush1.msra.mxu0 0.0
    %368 = vmatprep.subr.mxu0 0.0
    %369 = vmatpush1.msra.mxu0 0.0
    %370 = vmatprep.subr.mxu0 0.0
    %371 = vmatpush1.msra.mxu0 0.0
    %372 = vmatprep.subr.mxu0 0.0
    %373 = vmatpush1.msra.mxu0 0.0
    %374 = vmatprep.subr.mxu0 0.0
    %375 = vmatpush1.msra.mxu0 0.0
    %376 = vmatprep.subr.mxu0 0.0
    %377 = vmatpush1.msra.mxu0 0.0
    %378 = vmatprep.subr.mxu0 0.0
    %379 = vmatpush1.msra.mxu0 0.0
    %380 = vmatprep.subr.mxu0 0.0
    %381 = vmatpush1.msra.mxu0 0.0
    %382 = vmatprep.subr.mxu0 0.0
    %383 = vmatpush1.msra.mxu0 %v52
    %384 = vmatprep.subr.mxu0 0.0
    %385 = vmatpush2.msra.mxu0 0.0
    %386 = vmatprep.subr.mxu0 0.0
    %387 = vmatpush2.msra.mxu0 0.0
    %388 = vmatprep.subr.mxu0 0.0
    %389 = vmatpush2.msra.mxu0 0.0
    %390 = vmatprep.subr.mxu0 0.0
    %391 = vmatpush2.msra.mxu0 0.0
    %392 = vmatprep.subr.mxu0 0.0
    %393 = vmatpush2.msra.mxu0 0.0
    %394 = vmatprep.subr.mxu0 0.0
    %395 = vmatpush2.msra.mxu0 0.0
    %396 = vmatprep.subr.mxu0 0.0
    %397 = vmatpush2.msra.mxu0 0.0
    %398 = vmatprep.subr.mxu0 0.0
    %399 = vmatpush2.msra.mxu0 0.0
    %400 = vmatprep.subr.mxu0 0.0
    %401 = vmatpush2.msra.mxu0 0.0
    %402 = vmatprep.subr.mxu0 0.0
    %403 = vmatpush2.msra.mxu0 0.0
    %404 = vmatprep.subr.mxu0 0.0
    %405 = vmatpush2.msra.mxu0 0.0
    %406 = vmatprep.subr.mxu0 0.0
    %407 = vmatpush2.msra.mxu0 0.0
    %408 = vmatprep.subr.mxu0 0.0
    %409 = vmatpush2.msra.mxu0 0.0
    %410 = vmatprep.subr.mxu0 0.0
    %411 = vmatpush2.msra.mxu0 0.0
    %412 = vmatprep.subr.mxu0 0.0
    %413 = vmatpush2.msra.mxu0 0.0
    %414 = vmatprep.subr.mxu0 0.0
    %415 = vmatpush2.msra.mxu0 0.0
    %416 = vmatprep.mubr.f32.mxu0 0.0
    %417 = vmatmul.mubr.f32.gmra.mxu0 %v350
    %v418 = vpop.f32.mrf.mxu0
    %v419 = vadd.f32 0.0, %v418
    %v420 = vpop.f32.mrf.mxu0
    %421 = vdwg.mxu0
    %v423 = vsel %vm56, %v45, 0
    %425 = vmatprep.subr.mxu0 0.0
    %426 = vmatpush1.msra.mxu0 0.0
    %427 = vmatprep.subr.mxu0 0.0
    %428 = vmatpush1.msra.mxu0 0.0
    %429 = vmatprep.subr.mxu0 0.0
    %430 = vmatpush1.msra.mxu0 0.0
    %431 = vmatprep.subr.mxu0 0.0
    %432 = vmatpush1.msra.mxu0 0.0
    %433 = vmatprep.subr.mxu0 0.0
    %434 = vmatpush1.msra.mxu0 0.0
    %435 = vmatprep.subr.mxu0 0.0
    %436 = vmatpush1.msra.mxu0 0.0
    %437 = vmatprep.subr.mxu0 0.0
    %438 = vmatpush1.msra.mxu0 0.0
    %439 = vmatprep.subr.mxu0 0.0
    %440 = vmatpush1.msra.mxu0 0.0
    %441 = vmatprep.subr.mxu0 0.0
    %442 = vmatpush1.msra.mxu0 0.0
    %443 = vmatprep.subr.mxu0 0.0
    %444 = vmatpush1.msra.mxu0 0.0
    %445 = vmatprep.subr.mxu0 0.0
    %446 = vmatpush1.msra.mxu0 0.0
    %447 = vmatprep.subr.mxu0 0.0
    %448 = vmatpush1.msra.mxu0 0.0
    %449 = vmatprep.subr.mxu0 0.0
    %450 = vmatpush1.msra.mxu0 0.0
    %451 = vmatprep.subr.mxu0 0.0
    %452 = vmatpush1.msra.mxu0 0.0
    %453 = vmatprep.subr.mxu0 0.0
    %454 = vmatpush1.msra.mxu0 0.0
    %455 = vmatprep.subr.mxu0 0.0
    %456 = vmatpush1.msra.mxu0 %v53
    %457 = vmatprep.subr.mxu0 0.0
    %458 = vmatpush2.msra.mxu0 0.0
    %459 = vmatprep.subr.mxu0 0.0
    %460 = vmatpush2.msra.mxu0 0.0
    %461 = vmatprep.subr.mxu0 0.0
    %462 = vmatpush2.msra.mxu0 0.0
    %463 = vmatprep.subr.mxu0 0.0
    %464 = vmatpush2.msra.mxu0 0.0
    %465 = vmatprep.subr.mxu0 0.0
    %466 = vmatpush2.msra.mxu0 0.0
    %467 = vmatprep.subr.mxu0 0.0
    %468 = vmatpush2.msra.mxu0 0.0
    %469 = vmatprep.subr.mxu0 0.0
    %470 = vmatpush2.msra.mxu0 0.0
    %471 = vmatprep.subr.mxu0 0.0
    %472 = vmatpush2.msra.mxu0 0.0
    %473 = vmatprep.subr.mxu0 0.0
    %474 = vmatpush2.msra.mxu0 0.0
    %475 = vmatprep.subr.mxu0 0.0
    %476 = vmatpush2.msra.mxu0 0.0
    %477 = vmatprep.subr.mxu0 0.0
    %478 = vmatpush2.msra.mxu0 0.0
    %479 = vmatprep.subr.mxu0 0.0
    %480 = vmatpush2.msra.mxu0 0.0
    %481 = vmatprep.subr.mxu0 0.0
    %482 = vmatpush2.msra.mxu0 0.0
    %483 = vmatprep.subr.mxu0 0.0
    %484 = vmatpush2.msra.mxu0 0.0
    %485 = vmatprep.subr.mxu0 0.0
    %486 = vmatpush2.msra.mxu0 0.0
    %487 = vmatprep.subr.mxu0 0.0
    %488 = vmatpush2.msra.mxu0 0.0
    %489 = vmatprep.mubr.f32.mxu0 0.0
    %490 = vmatmul.mubr.f32.gmra.mxu0 %v423
    %v491 = vpop.f32.mrf.mxu0
    %v492 = vadd.f32 0.0, %v491
    %v493 = vpop.f32.mrf.mxu0
    %494 = vdwg.mxu0
    %v496 = vsel %vm56, %v46, 0
    %498 = vmatprep.subr.mxu0 0.0
    %499 = vmatpush1.msra.mxu0 0.0
    %500 = vmatprep.subr.mxu0 0.0
    %501 = vmatpush1.msra.mxu0 0.0
    %502 = vmatprep.subr.mxu0 0.0
    %503 = vmatpush1.msra.mxu0 0.0
    %504 = vmatprep.subr.mxu0 0.0
    %505 = vmatpush1.msra.mxu0 0.0
    %506 = vmatprep.subr.mxu0 0.0
    %507 = vmatpush1.msra.mxu0 0.0
    %508 = vmatprep.subr.mxu0 0.0
    %509 = vmatpush1.msra.mxu0 0.0
    %510 = vmatprep.subr.mxu0 0.0
    %511 = vmatpush1.msra.mxu0 0.0
    %512 = vmatprep.subr.mxu0 0.0
    %513 = vmatpush1.msra.mxu0 0.0
    %514 = vmatprep.subr.mxu0 0.0
    %515 = vmatpush1.msra.mxu0 0.0
    %516 = vmatprep.subr.mxu0 0.0
    %517 = vmatpush1.msra.mxu0 0.0
    %518 = vmatprep.subr.mxu0 0.0
    %519 = vmatpush1.msra.mxu0 0.0
    %520 = vmatprep.subr.mxu0 0.0
    %521 = vmatpush1.msra.mxu0 0.0
    %522 = vmatprep.subr.mxu0 0.0
    %523 = vmatpush1.msra.mxu0 0.0
    %524 = vmatprep.subr.mxu0 0.0
    %525 = vmatpush1.msra.mxu0 0.0
    %526 = vmatprep.subr.mxu0 0.0
    %527 = vmatpush1.msra.mxu0 0.0
    %528 = vmatprep.subr.mxu0 0.0
    %529 = vmatpush1.msra.mxu0 %v54
    %530 = vmatprep.subr.mxu0 0.0
    %531 = vmatpush2.msra.mxu0 0.0
    %532 = vmatprep.subr.mxu0 0.0
    %533 = vmatpush2.msra.mxu0 0.0
    %534 = vmatprep.subr.mxu0 0.0
    %535 = vmatpush2.msra.mxu0 0.0
    %536 = vmatprep.subr.mxu0 0.0
    %537 = vmatpush2.msra.mxu0 0.0
    %538 = vmatprep.subr.mxu0 0.0
    %539 = vmatpush2.msra.mxu0 0.0
    %540 = vmatprep.subr.mxu0 0.0
    %541 = vmatpush2.msra.mxu0 0.0
    %542 = vmatprep.subr.mxu0 0.0
    %543 = vmatpush2.msra.mxu0 0.0
    %544 = vmatprep.subr.mxu0 0.0
    %545 = vmatpush2.msra.mxu0 0.0
    %546 = vmatprep.subr.mxu0 0.0
    %547 = vmatpush2.msra.mxu0 0.0
    %548 = vmatprep.subr.mxu0 0.0
    %549 = vmatpush2.msra.mxu0 0.0
    %550 = vmatprep.subr.mxu0 0.0
    %551 = vmatpush2.msra.mxu0 0.0
    %552 = vmatprep.subr.mxu0 0.0
    %553 = vmatpush2.msra.mxu0 0.0
    %554 = vmatprep.subr.mxu0 0.0
    %555 = vmatpush2.msra.mxu0 0.0
    %556 = vmatprep.subr.mxu0 0.0
    %557 = vmatpush2.msra.mxu0 0.0
    %558 = vmatprep.subr.mxu0 0.0
    %559 = vmatpush2.msra.mxu0 0.0
    %560 = vmatprep.subr.mxu0 0.0
    %561 = vmatpush2.msra.mxu0 0.0
    %562 = vmatprep.mubr.f32.mxu0 0.0
    %563 = vmatmul.mubr.f32.gmra.mxu0 %v496
    %v564 = vpop.f32.mrf.mxu0
    %v565 = vadd.f32 0.0, %v564
    %v566 = vpop.f32.mrf.mxu0
    %567 = vdwg.mxu0
    %v569 = vsel %vm56, %v47, 0
    %571 = vmatprep.subr.mxu0 0.0
    %572 = vmatpush1.msra.mxu0 0.0
    %573 = vmatprep.subr.mxu0 0.0
    %574 = vmatpush1.msra.mxu0 0.0
    %575 = vmatprep.subr.mxu0 0.0
    %576 = vmatpush1.msra.mxu0 0.0
    %577 = vmatprep.subr.mxu0 0.0
    %578 = vmatpush1.msra.mxu0 0.0
    %579 = vmatprep.subr.mxu0 0.0
    %580 = vmatpush1.msra.mxu0 0.0
    %581 = vmatprep.subr.mxu0 0.0
    %582 = vmatpush1.msra.mxu0 0.0
    %583 = vmatprep.subr.mxu0 0.0
    %584 = vmatpush1.msra.mxu0 0.0
    %585 = vmatprep.subr.mxu0 0.0
    %586 = vmatpush1.msra.mxu0 0.0
    %587 = vmatprep.subr.mxu0 0.0
    %588 = vmatpush1.msra.mxu0 0.0
    %589 = vmatprep.subr.mxu0 0.0
    %590 = vmatpush1.msra.mxu0 0.0
    %591 = vmatprep.subr.mxu0 0.0
    %592 = vmatpush1.msra.mxu0 0.0
    %593 = vmatprep.subr.mxu0 0.0
    %594 = vmatpush1.msra.mxu0 0.0
    %595 = vmatprep.subr.mxu0 0.0
    %596 = vmatpush1.msra.mxu0 0.0
    %597 = vmatprep.subr.mxu0 0.0
    %598 = vmatpush1.msra.mxu0 0.0
    %599 = vmatprep.subr.mxu0 0.0
    %600 = vmatpush1.msra.mxu0 0.0
    %601 = vmatprep.subr.mxu0 0.0
    %602 = vmatpush1.msra.mxu0 %v55
    %603 = vmatprep.subr.mxu0 0.0
    %604 = vmatpush2.msra.mxu0 0.0
    %605 = vmatprep.subr.mxu0 0.0
    %606 = vmatpush2.msra.mxu0 0.0
    %607 = vmatprep.subr.mxu0 0.0
    %608 = vmatpush2.msra.mxu0 0.0
    %609 = vmatprep.subr.mxu0 0.0
    %610 = vmatpush2.msra.mxu0 0.0
    %611 = vmatprep.subr.mxu0 0.0
    %612 = vmatpush2.msra.mxu0 0.0
    %613 = vmatprep.subr.mxu0 0.0
    %614 = vmatpush2.msra.mxu0 0.0
    %615 = vmatprep.subr.mxu0 0.0
    %616 = vmatpush2.msra.mxu0 0.0
    %617 = vmatprep.subr.mxu0 0.0
    %618 = vmatpush2.msra.mxu0 0.0
    %619 = vmatprep.subr.mxu0 0.0
    %620 = vmatpush2.msra.mxu0 0.0
    %621 = vmatprep.subr.mxu0 0.0
    %622 = vmatpush2.msra.mxu0 0.0
    %623 = vmatprep.subr.mxu0 0.0
    %624 = vmatpush2.msra.mxu0 0.0
    %625 = vmatprep.subr.mxu0 0.0
    %626 = vmatpush2.msra.mxu0 0.0
    %627 = vmatprep.subr.mxu0 0.0
    %628 = vmatpush2.msra.mxu0 0.0
    %629 = vmatprep.subr.mxu0 0.0
    %630 = vmatpush2.msra.mxu0 0.0
    %631 = vmatprep.subr.mxu0 0.0
    %632 = vmatpush2.msra.mxu0 0.0
    %633 = vmatprep.subr.mxu0 0.0
    %634 = vmatpush2.msra.mxu0 0.0
    %635 = vmatprep.mubr.f32.mxu0 0.0
    %636 = vmatmul.mubr.f32.gmra.mxu0 %v569
    %v637 = vpop.f32.mrf.mxu0
    %v638 = vadd.f32 0.0, %v637
    %v639 = vpop.f32.mrf.mxu0
    %640 = vdwg.mxu0
    %vm641 = vcmask 517120
    %v642 = vsel %vm641, %v127, 0.0
    %v643 = vsel %vm641, %v200, 0.0
    %v644 = vadd.f32 %v642, %v643
    %v645 = vsel %vm641, %v273, 0.0
    %v646 = vadd.f32 %v644, %v645
    %v647 = vsel %vm641, %v346, 0.0
    %v648 = vadd.f32 %v646, %v647
    %v649 = vsel %vm641, %v419, 0.0
    %v650 = vadd.f32 %v648, %v649
    %v651 = vsel %vm641, %v492, 0.0
    %v652 = vadd.f32 %v650, %v651
    %v653 = vsel %vm641, %v565, 0.0
    %v654 = vadd.f32 %v652, %v653
    %v655 = vsel %vm641, %v638, 0.0
    %v656 = vadd.f32 %v654, %v655
    %v657 = vmul.f32 %v656, 0.125
    %v658 = vmul.f32 %v657, %v657
    %vm659 = vcmask 123904
    %v660 = vsel %vm659, %v658, 0.0
    %661 = vadd.xlane.f32.xlu0 %v660
    %v662 = vpop.xlane.xlu0 %661
    %664 = vrot.lane.b32.xlu0 %v658, 112
    %v665 = vpop.permute.xlu0 %664
    %v667 = vsel %vm659, %v665, 0.0
    %668 = vadd.xlane.f32.xlu0 %v667
    %v669 = vpop.xlane.xlu0 %668
    %670 = vrot.lane.b32.xlu0 %v658, 96
    %v671 = vpop.permute.xlu0 %670
    %v673 = vsel %vm659, %v671, 0.0
    %674 = vadd.xlane.f32.xlu0 %v673
    %v675 = vpop.xlane.xlu0 %674
    %676 = vrot.lane.b32.xlu0 %v658, 80
    %v677 = vpop.permute.xlu0 %676
    %v679 = vsel %vm659, %v677, 0.0
    %680 = vadd.xlane.f32.xlu0 %v679
    %v681 = vpop.xlane.xlu0 %680
    %vm682 = vcmask 7168
    %v683 = vsel %vm682, %v662, %v669
    %vm684 = vcmask 15360
    %v685 = vsel %vm684, %v683, %v675
    %vm686 = vcmask 23552
    %v687 = vsel %vm686, %v685, %v681
    %v688 = vrsqrt.pop %v687
    %v689 = vmul.f32 %v687, %v688
    %vm690 = vcmp.eq.f32.partialorder %v687, inf
    %v691 = vsel %vm690, %v687, %v689
    %vm692 = vcmp.eq.f32.partialorder %v687, 0.0
    %v693 = vand.u32 %v687, 2147483648
    %v694 = vsel %vm692, %v693, %v691
    %v695 = vadd.f32 %v687, 1.0
    %v696 = vrcp.pop %v695
    %v697 = vmul.f32 %v694, %v696
    %699 = vset.pattern.permute.xlu0 0
    %700 = vperm.xlu0 %699, %v697
    %v701 = vpop.permute.xlu0 %700
    %703 = vset.pattern.permute.xlu0 1
    %704 = vperm.xlu0 %703, %v697
    %v705 = vpop.permute.xlu0 %704
    %707 = vset.pattern.permute.xlu0 2
    %708 = vperm.xlu0 %707, %v697
    %v709 = vpop.permute.xlu0 %708
    %711 = vset.pattern.permute.xlu0 3
    %712 = vperm.xlu0 %711, %v697
    %v713 = vpop.permute.xlu0 %712
    %vm715 = vcmask 130048
    %v716 = vsel %vm715, %v701, %v705
    %vm717 = vcmask 261120
    %v718 = vsel %vm717, %v716, %v709
    %vm719 = vcmask 392192
    %v720 = vsel %vm719, %v718, %v713
    %v721 = vmul.f32 %v657, %v720
    %v722 = vmul.f32 %v127, %v721
    %v723 = vmul.f32 %v200, %v721
    %v724 = vmul.f32 %v273, %v721
    %v725 = vmul.f32 %v346, %v721
    %v726 = vmul.f32 %v419, %v721
    %v727 = vmul.f32 %v492, %v721
    %v728 = vmul.f32 %v565, %v721
    %v729 = vmul.f32 %v638, %v721
    %v730 = vsel %vm659, %v722, 0.0
    %731 = vadd.xlane.f32.xlu0 %v730
    %v732 = vpop.xlane.xlu0 %731
    %v733 = vsel %vm659, %v723, 0.0
    %734 = vadd.xlane.f32.xlu0 %v733
    %v735 = vpop.xlane.xlu0 %734
    %v736 = vsel %vm659, %v724, 0.0
    %737 = vadd.xlane.f32.xlu0 %v736
    %v738 = vpop.xlane.xlu0 %737
    %v739 = vsel %vm659, %v725, 0.0
    %740 = vadd.xlane.f32.xlu0 %v739
    %v741 = vpop.xlane.xlu0 %740
    %v742 = vsel %vm659, %v726, 0.0
    %743 = vadd.xlane.f32.xlu0 %v742
    %v744 = vpop.xlane.xlu0 %743
    %v745 = vsel %vm659, %v727, 0.0
    %746 = vadd.xlane.f32.xlu0 %v745
    %v747 = vpop.xlane.xlu0 %746
    %v748 = vsel %vm659, %v728, 0.0
    %749 = vadd.xlane.f32.xlu0 %v748
    %v750 = vpop.xlane.xlu0 %749
    %v751 = vsel %vm659, %v729, 0.0
    %752 = vadd.xlane.f32.xlu0 %v751
    %v753 = vpop.xlane.xlu0 %752
    %762 = vrot.lane.b32.xlu0 %v722, 112
    %v763 = vpop.permute.xlu0 %762
    %764 = vrot.lane.b32.xlu0 %v723, 112
    %v765 = vpop.permute.xlu0 %764
    %766 = vrot.lane.b32.xlu0 %v724, 112
    %v767 = vpop.permute.xlu0 %766
    %768 = vrot.lane.b32.xlu0 %v725, 112
    %v769 = vpop.permute.xlu0 %768
    %770 = vrot.lane.b32.xlu0 %v726, 112
    %v771 = vpop.permute.xlu0 %770
    %772 = vrot.lane.b32.xlu0 %v727, 112
    %v773 = vpop.permute.xlu0 %772
    %774 = vrot.lane.b32.xlu0 %v728, 112
    %v775 = vpop.permute.xlu0 %774
    %776 = vrot.lane.b32.xlu0 %v729, 112
    %v777 = vpop.permute.xlu0 %776
    %v786 = vsel %vm659, %v763, 0.0
    %787 = vadd.xlane.f32.xlu0 %v786
    %v788 = vpop.xlane.xlu0 %787
    %v789 = vsel %vm659, %v765, 0.0
    %790 = vadd.xlane.f32.xlu0 %v789
    %v791 = vpop.xlane.xlu0 %790
    %v792 = vsel %vm659, %v767, 0.0
    %793 = vadd.xlane.f32.xlu0 %v792
    %v794 = vpop.xlane.xlu0 %793
    %v795 = vsel %vm659, %v769, 0.0
    %796 = vadd.xlane.f32.xlu0 %v795
    %v797 = vpop.xlane.xlu0 %796
    %v798 = vsel %vm659, %v771, 0.0
    %799 = vadd.xlane.f32.xlu0 %v798
    %v800 = vpop.xlane.xlu0 %799
    %v801 = vsel %vm659, %v773, 0.0
    %802 = vadd.xlane.f32.xlu0 %v801
    %v803 = vpop.xlane.xlu0 %802
    %v804 = vsel %vm659, %v775, 0.0
    %805 = vadd.xlane.f32.xlu0 %v804
    %v806 = vpop.xlane.xlu0 %805
    %v807 = vsel %vm659, %v777, 0.0
    %808 = vadd.xlane.f32.xlu0 %v807
    %v809 = vpop.xlane.xlu0 %808
    %810 = vrot.lane.b32.xlu0 %v722, 96
    %v811 = vpop.permute.xlu0 %810
    %812 = vrot.lane.b32.xlu0 %v723, 96
    %v813 = vpop.permute.xlu0 %812
    %814 = vrot.lane.b32.xlu0 %v724, 96
    %v815 = vpop.permute.xlu0 %814
    %816 = vrot.lane.b32.xlu0 %v725, 96
    %v817 = vpop.permute.xlu0 %816
    %818 = vrot.lane.b32.xlu0 %v726, 96
    %v819 = vpop.permute.xlu0 %818
    %820 = vrot.lane.b32.xlu0 %v727, 96
    %v821 = vpop.permute.xlu0 %820
    %822 = vrot.lane.b32.xlu0 %v728, 96
    %v823 = vpop.permute.xlu0 %822
    %824 = vrot.lane.b32.xlu0 %v729, 96
    %v825 = vpop.permute.xlu0 %824
    %v834 = vsel %vm659, %v811, 0.0
    %835 = vadd.xlane.f32.xlu0 %v834
    %v836 = vpop.xlane.xlu0 %835
    %v837 = vsel %vm659, %v813, 0.0
    %838 = vadd.xlane.f32.xlu0 %v837
    %v839 = vpop.xlane.xlu0 %838
    %v840 = vsel %vm659, %v815, 0.0
    %841 = vadd.xlane.f32.xlu0 %v840
    %v842 = vpop.xlane.xlu0 %841
    %v843 = vsel %vm659, %v817, 0.0
    %844 = vadd.xlane.f32.xlu0 %v843
    %v845 = vpop.xlane.xlu0 %844
    %v846 = vsel %vm659, %v819, 0.0
    %847 = vadd.xlane.f32.xlu0 %v846
    %v848 = vpop.xlane.xlu0 %847
    %v849 = vsel %vm659, %v821, 0.0
    %850 = vadd.xlane.f32.xlu0 %v849
    %v851 = vpop.xlane.xlu0 %850
    %v852 = vsel %vm659, %v823, 0.0
    %853 = vadd.xlane.f32.xlu0 %v852
    %v854 = vpop.xlane.xlu0 %853
    %v855 = vsel %vm659, %v825, 0.0
    %856 = vadd.xlane.f32.xlu0 %v855
    %v857 = vpop.xlane.xlu0 %856
    %858 = vrot.lane.b32.xlu0 %v722, 80
    %v859 = vpop.permute.xlu0 %858
    %860 = vrot.lane.b32.xlu0 %v723, 80
    %v861 = vpop.permute.xlu0 %860
    %862 = vrot.lane.b32.xlu0 %v724, 80
    %v863 = vpop.permute.xlu0 %862
    %864 = vrot.lane.b32.xlu0 %v725, 80
    %v865 = vpop.permute.xlu0 %864
    %866 = vrot.lane.b32.xlu0 %v726, 80
    %v867 = vpop.permute.xlu0 %866
    %868 = vrot.lane.b32.xlu0 %v727, 80
    %v869 = vpop.permute.xlu0 %868
    %870 = vrot.lane.b32.xlu0 %v728, 80
    %v871 = vpop.permute.xlu0 %870
    %872 = vrot.lane.b32.xlu0 %v729, 80
    %v873 = vpop.permute.xlu0 %872
    %v882 = vsel %vm659, %v859, 0.0
    %883 = vadd.xlane.f32.xlu0 %v882
    %v884 = vpop.xlane.xlu0 %883
    %v885 = vsel %vm659, %v861, 0.0
    %886 = vadd.xlane.f32.xlu0 %v885
    %v887 = vpop.xlane.xlu0 %886
    %v888 = vsel %vm659, %v863, 0.0
    %889 = vadd.xlane.f32.xlu0 %v888
    %v890 = vpop.xlane.xlu0 %889
    %v891 = vsel %vm659, %v865, 0.0
    %892 = vadd.xlane.f32.xlu0 %v891
    %v893 = vpop.xlane.xlu0 %892
    %v894 = vsel %vm659, %v867, 0.0
    %895 = vadd.xlane.f32.xlu0 %v894
    %v896 = vpop.xlane.xlu0 %895
    %v897 = vsel %vm659, %v869, 0.0
    %898 = vadd.xlane.f32.xlu0 %v897
    %v899 = vpop.xlane.xlu0 %898
    %v900 = vsel %vm659, %v871, 0.0
    %901 = vadd.xlane.f32.xlu0 %v900
    %v902 = vpop.xlane.xlu0 %901
    %v903 = vsel %vm659, %v873, 0.0
    %904 = vadd.xlane.f32.xlu0 %v903
    %v905 = vpop.xlane.xlu0 %904
    %v906 = vsel %vm682, %v732, %v788
    %v907 = vsel %vm682, %v735, %v791
    %v908 = vsel %vm682, %v738, %v794
    %v909 = vsel %vm682, %v741, %v797
    %v910 = vsel %vm682, %v744, %v800
    %v911 = vsel %vm682, %v747, %v803
    %v912 = vsel %vm682, %v750, %v806
    %v913 = vsel %vm682, %v753, %v809
    %v914 = vsel %vm684, %v906, %v836
    %v915 = vsel %vm684, %v907, %v839
    %v916 = vsel %vm684, %v908, %v842
    %v917 = vsel %vm684, %v909, %v845
    %v918 = vsel %vm684, %v910, %v848
    %v919 = vsel %vm684, %v911, %v851
    %v920 = vsel %vm684, %v912, %v854
    %v921 = vsel %vm684, %v913, %v857
    %v922 = vsel %vm686, %v914, %v884
    %v923 = vsel %vm686, %v915, %v887
    %v924 = vsel %vm686, %v916, %v890
    %v925 = vsel %vm686, %v917, %v893
    %v926 = vsel %vm686, %v918, %v896
    %v927 = vsel %vm686, %v919, %v899
    %v928 = vsel %vm686, %v920, %v902
    %v929 = vsel %vm686, %v921, %v905
    %v930 = vadd.f32 %v922, 0.0
    %v931 = vadd.f32 %v923, 0.0
    %v932 = vadd.f32 %v924, 0.0
    %v933 = vadd.f32 %v925, 0.0
    %v934 = vadd.f32 %v926, 0.0
    %v935 = vadd.f32 %v927, 0.0
    %v936 = vadd.f32 %v928, 0.0
    %v937 = vadd.f32 %v929, 0.0
    %vm938 = vcmask 25600
    %v939 = vsel %vm938, %v930, -inf
    %v940 = vsel %vm938, %v931, -inf
    %v941 = vsel %vm938, %v932, -inf
    %v942 = vsel %vm938, %v933, -inf
    %v943 = vsel %vm938, %v934, -inf
    %v944 = vmax.f32 %v939, %v943
    %v945 = vsel %vm938, %v935, -inf
    %v946 = vmax.f32 %v940, %v945
    %v947 = vsel %vm938, %v936, -inf
    %v948 = vmax.f32 %v941, %v947
    %v949 = vsel %vm938, %v937, -inf
    %v950 = vmax.f32 %v942, %v949
    %v951 = vmax.f32 %v944, %v946
    %v952 = vmax.f32 %v948, %v950
    %v953 = vmax.f32 %v951, %v952
    %v954 = vsub.f32 %v930, %v953
    %v955 = vsub.f32 %v931, %v953
    %v956 = vsub.f32 %v932, %v953
    %v957 = vsub.f32 %v933, %v953
    %v958 = vsub.f32 %v934, %v953
    %v959 = vsub.f32 %v935, %v953
    %v960 = vsub.f32 %v936, %v953
    %v961 = vsub.f32 %v937, %v953
    %v962 = vmul.f32 %v954, 1.442695
    %v963 = vpow.pop %v962
    %v964 = vmul.f32 %v955, 1.442695
    %v965 = vpow.pop %v964
    %v966 = vmul.f32 %v956, 1.442695
    %v967 = vpow.pop %v966
    %v968 = vmul.f32 %v957, 1.442695
    %v969 = vpow.pop %v968
    %v970 = vmul.f32 %v958, 1.442695
    %v971 = vpow.pop %v970
    %v972 = vmul.f32 %v959, 1.442695
    %v973 = vpow.pop %v972
    %v974 = vmul.f32 %v960, 1.442695
    %v975 = vpow.pop %v974
    %v976 = vmul.f32 %v961, 1.442695
    %v977 = vpow.pop %v976
    %v978 = vsel %vm938, %v963, 0.0
    %v979 = vsel %vm938, %v965, 0.0
    %v980 = vadd.f32 %v978, %v979
    %v981 = vsel %vm938, %v967, 0.0
    %v982 = vadd.f32 %v980, %v981
    %v983 = vsel %vm938, %v969, 0.0
    %v984 = vadd.f32 %v982, %v983
    %v985 = vsel %vm938, %v971, 0.0
    %v986 = vadd.f32 %v984, %v985
    %v987 = vsel %vm938, %v973, 0.0
    %v988 = vadd.f32 %v986, %v987
    %v989 = vsel %vm938, %v975, 0.0
    %v990 = vadd.f32 %v988, %v989
    %v991 = vsel %vm938, %v977, 0.0
    %v992 = vadd.f32 %v990, %v991
    %v993 = vrcp.pop %v992
    %v994 = vmul.f32 %v963, %v993
    %v995 = vmul.f32 %v965, %v993
    %v996 = vmul.f32 %v967, %v993
    %v997 = vmul.f32 %v969, %v993
    %v998 = vmul.f32 %v971, %v993
    %v999 = vmul.f32 %v973, %v993
    %v1000 = vmul.f32 %v975, %v993
    %v1001 = vmul.f32 %v977, %v993
    %1003 = vset.pattern.permute.xlu0 0
    %1004 = vperm.xlu0 %1003, %v994
    %v1005 = vpop.permute.xlu0 %1004
    %1008 = vset.pattern.permute.xlu0 0
    %1009 = vperm.xlu0 %1008, %v995
    %v1010 = vpop.permute.xlu0 %1009
    %1013 = vset.pattern.permute.xlu0 0
    %1014 = vperm.xlu0 %1013, %v996
    %v1015 = vpop.permute.xlu0 %1014
    %1018 = vset.pattern.permute.xlu0 0
    %1019 = vperm.xlu0 %1018, %v997
    %v1020 = vpop.permute.xlu0 %1019
    %1023 = vset.pattern.permute.xlu0 0
    %1024 = vperm.xlu0 %1023, %v998
    %v1025 = vpop.permute.xlu0 %1024
    %1028 = vset.pattern.permute.xlu0 0
    %1029 = vperm.xlu0 %1028, %v999
    %v1030 = vpop.permute.xlu0 %1029
    %1033 = vset.pattern.permute.xlu0 0
    %1034 = vperm.xlu0 %1033, %v1000
    %v1035 = vpop.permute.xlu0 %1034
    %1038 = vset.pattern.permute.xlu0 0
    %1039 = vperm.xlu0 %1038, %v1001
    %v1040 = vpop.permute.xlu0 %1039
    %1042 = vset.pattern.permute.xlu0 1
    %1043 = vperm.xlu0 %1042, %v994
    %v1044 = vpop.permute.xlu0 %1043
    %1046 = vset.pattern.permute.xlu0 1
    %1047 = vperm.xlu0 %1046, %v995
    %v1048 = vpop.permute.xlu0 %1047
    %1050 = vset.pattern.permute.xlu0 1
    %1051 = vperm.xlu0 %1050, %v996
    %v1052 = vpop.permute.xlu0 %1051
    %1054 = vset.pattern.permute.xlu0 1
    %1055 = vperm.xlu0 %1054, %v997
    %v1056 = vpop.permute.xlu0 %1055
    %1058 = vset.pattern.permute.xlu0 1
    %1059 = vperm.xlu0 %1058, %v998
    %v1060 = vpop.permute.xlu0 %1059
    %1062 = vset.pattern.permute.xlu0 1
    %1063 = vperm.xlu0 %1062, %v999
    %v1064 = vpop.permute.xlu0 %1063
    %1066 = vset.pattern.permute.xlu0 1
    %1067 = vperm.xlu0 %1066, %v1000
    %v1068 = vpop.permute.xlu0 %1067
    %1070 = vset.pattern.permute.xlu0 1
    %1071 = vperm.xlu0 %1070, %v1001
    %v1072 = vpop.permute.xlu0 %1071
    %1074 = vset.pattern.permute.xlu0 2
    %1075 = vperm.xlu0 %1074, %v994
    %v1076 = vpop.permute.xlu0 %1075
    %1078 = vset.pattern.permute.xlu0 2
    %1079 = vperm.xlu0 %1078, %v995
    %v1080 = vpop.permute.xlu0 %1079
    %1082 = vset.pattern.permute.xlu0 2
    %1083 = vperm.xlu0 %1082, %v996
    %v1084 = vpop.permute.xlu0 %1083
    %1086 = vset.pattern.permute.xlu0 2
    %1087 = vperm.xlu0 %1086, %v997
    %v1088 = vpop.permute.xlu0 %1087
    %1090 = vset.pattern.permute.xlu0 2
    %1091 = vperm.xlu0 %1090, %v998
    %v1092 = vpop.permute.xlu0 %1091
    %1094 = vset.pattern.permute.xlu0 2
    %1095 = vperm.xlu0 %1094, %v999
    %v1096 = vpop.permute.xlu0 %1095
    %1098 = vset.pattern.permute.xlu0 2
    %1099 = vperm.xlu0 %1098, %v1000
    %v1100 = vpop.permute.xlu0 %1099
    %1102 = vset.pattern.permute.xlu0 2
    %1103 = vperm.xlu0 %1102, %v1001
    %v1104 = vpop.permute.xlu0 %1103
    %1106 = vset.pattern.permute.xlu0 3
    %1107 = vperm.xlu0 %1106, %v994
    %v1108 = vpop.permute.xlu0 %1107
    %1110 = vset.pattern.permute.xlu0 3
    %1111 = vperm.xlu0 %1110, %v995
    %v1112 = vpop.permute.xlu0 %1111
    %1114 = vset.pattern.permute.xlu0 3
    %1115 = vperm.xlu0 %1114, %v996
    %v1116 = vpop.permute.xlu0 %1115
    %1118 = vset.pattern.permute.xlu0 3
    %1119 = vperm.xlu0 %1118, %v997
    %v1120 = vpop.permute.xlu0 %1119
    %1122 = vset.pattern.permute.xlu0 3
    %1123 = vperm.xlu0 %1122, %v998
    %v1124 = vpop.permute.xlu0 %1123
    %1126 = vset.pattern.permute.xlu0 3
    %1127 = vperm.xlu0 %1126, %v999
    %v1128 = vpop.permute.xlu0 %1127
    %1130 = vset.pattern.permute.xlu0 3
    %1131 = vperm.xlu0 %1130, %v1000
    %v1132 = vpop.permute.xlu0 %1131
    %1134 = vset.pattern.permute.xlu0 3
    %1135 = vperm.xlu0 %1134, %v1001
    %v1136 = vpop.permute.xlu0 %1135
    %v1138 = vsel %vm715, %v1005, %v1044
    %v1139 = vsel %vm715, %v1010, %v1048
    %v1140 = vsel %vm715, %v1015, %v1052
    %v1141 = vsel %vm715, %v1020, %v1056
    %v1142 = vsel %vm715, %v1025, %v1060
    %v1143 = vsel %vm715, %v1030, %v1064
    %v1144 = vsel %vm715, %v1035, %v1068
    %v1145 = vsel %vm715, %v1040, %v1072
    %v1146 = vsel %vm717, %v1138, %v1076
    %v1147 = vsel %vm717, %v1139, %v1080
    %v1148 = vsel %vm717, %v1140, %v1084
    %v1149 = vsel %vm717, %v1141, %v1088
    %v1150 = vsel %vm717, %v1142, %v1092
    %v1151 = vsel %vm717, %v1143, %v1096
    %v1152 = vsel %vm717, %v1144, %v1100
    %v1153 = vsel %vm717, %v1145, %v1104
    %v1154 = vsel %vm719, %v1146, %v1108
    %v1155 = vsel %vm719, %v1147, %v1112
    %v1156 = vsel %vm719, %v1148, %v1116
    %v1157 = vsel %vm719, %v1149, %v1120
    %v1158 = vsel %vm719, %v1150, %v1124
    %v1159 = vsel %vm719, %v1151, %v1128
    %v1160 = vsel %vm719, %v1152, %v1132
    %v1161 = vsel %vm719, %v1153, %v1136
    %v1162 = vmul.f32 %v1154, %v127
    %v1163 = vmul.f32 %v1155, %v200
    %v1164 = vmul.f32 %v1156, %v273
    %v1165 = vmul.f32 %v1157, %v346
    %v1166 = vmul.f32 %v1158, %v419
    %v1167 = vmul.f32 %v1159, %v492
    %v1168 = vmul.f32 %v1160, %v565
    %v1169 = vmul.f32 %v1161, %v638
    %v1170 = vsel %vm641, %v1162, 0.0
    %v1171 = vsel %vm641, %v1163, 0.0
    %v1172 = vadd.f32 %v1170, %v1171
    %v1173 = vsel %vm641, %v1164, 0.0
    %v1174 = vadd.f32 %v1172, %v1173
    %v1175 = vsel %vm641, %v1165, 0.0
    %v1176 = vadd.f32 %v1174, %v1175
    %v1177 = vsel %vm641, %v1166, 0.0
    %v1178 = vadd.f32 %v1176, %v1177
    %v1179 = vsel %vm641, %v1167, 0.0
    %v1180 = vadd.f32 %v1178, %v1179
    %v1181 = vsel %vm641, %v1168, 0.0
    %v1182 = vadd.f32 %v1180, %v1181
    %v1183 = vsel %vm641, %v1169, 0.0
    %v1184 = vadd.f32 %v1182, %v1183
    %v1185 = vmul.f32 %v1184, %v1184
    %v1186 = vsel %vm659, %v1185, 0.0
    %1187 = vadd.xlane.f32.xlu0 %v1186
    %v1188 = vpop.xlane.xlu0 %1187
    %1190 = vrot.lane.b32.xlu0 %v1185, 112
    %v1191 = vpop.permute.xlu0 %1190
    %v1193 = vsel %vm659, %v1191, 0.0
    %1194 = vadd.xlane.f32.xlu0 %v1193
    %v1195 = vpop.xlane.xlu0 %1194
    %1196 = vrot.lane.b32.xlu0 %v1185, 96
    %v1197 = vpop.permute.xlu0 %1196
    %v1199 = vsel %vm659, %v1197, 0.0
    %1200 = vadd.xlane.f32.xlu0 %v1199
    %v1201 = vpop.xlane.xlu0 %1200
    %1202 = vrot.lane.b32.xlu0 %v1185, 80
    %v1203 = vpop.permute.xlu0 %1202
    %v1205 = vsel %vm659, %v1203, 0.0
    %1206 = vadd.xlane.f32.xlu0 %v1205
    %v1207 = vpop.xlane.xlu0 %1206
    %v1208 = vsel %vm682, %v1188, %v1195
    %v1209 = vsel %vm684, %v1208, %v1201
    %v1210 = vsel %vm686, %v1209, %v1207
    %v1211 = vrsqrt.pop %v1210
    %v1212 = vmul.f32 %v1210, %v1211
    %vm1213 = vcmp.eq.f32.partialorder %v1210, inf
    %v1214 = vsel %vm1213, %v1210, %v1212
    %vm1215 = vcmp.eq.f32.partialorder %v1210, 0.0
    %v1216 = vand.u32 %v1210, 2147483648
    %v1217 = vsel %vm1215, %v1216, %v1214
    %v1218 = vadd.f32 %v1210, 1.0
    %v1219 = vrcp.pop %v1218
    %v1220 = vmul.f32 %v1217, %v1219
    %1222 = vset.pattern.permute.xlu0 0
    %1223 = vperm.xlu0 %1222, %v1220
    %v1224 = vpop.permute.xlu0 %1223
    %1226 = vset.pattern.permute.xlu0 1
    %1227 = vperm.xlu0 %1226, %v1220
    %v1228 = vpop.permute.xlu0 %1227
    %1230 = vset.pattern.permute.xlu0 2
    %1231 = vperm.xlu0 %1230, %v1220
    %v1232 = vpop.permute.xlu0 %1231
    %1234 = vset.pattern.permute.xlu0 3
    %1235 = vperm.xlu0 %1234, %v1220
    %v1236 = vpop.permute.xlu0 %1235
    %v1238 = vsel %vm715, %v1224, %v1228
    %v1239 = vsel %vm717, %v1238, %v1232
    %v1240 = vsel %vm719, %v1239, %v1236
    %v1241 = vmul.f32 %v1184, %v1240
    %v1242 = vmul.f32 %v127, %v1241
    %v1243 = vmul.f32 %v200, %v1241
    %v1244 = vmul.f32 %v273, %v1241
    %v1245 = vmul.f32 %v346, %v1241
    %v1246 = vmul.f32 %v419, %v1241
    %v1247 = vmul.f32 %v492, %v1241
    %v1248 = vmul.f32 %v565, %v1241
    %v1249 = vmul.f32 %v638, %v1241
    %v1250 = vsel %vm659, %v1242, 0.0
    %1251 = vadd.xlane.f32.xlu0 %v1250
    %v1252 = vpop.xlane.xlu0 %1251
    %v1253 = vsel %vm659, %v1243, 0.0
    %1254 = vadd.xlane.f32.xlu0 %v1253
    %v1255 = vpop.xlane.xlu0 %1254
    %v1256 = vsel %vm659, %v1244, 0.0
    %1257 = vadd.xlane.f32.xlu0 %v1256
    %v1258 = vpop.xlane.xlu0 %1257
    %v1259 = vsel %vm659, %v1245, 0.0
    %1260 = vadd.xlane.f32.xlu0 %v1259
    %v1261 = vpop.xlane.xlu0 %1260
    %v1262 = vsel %vm659, %v1246, 0.0
    %1263 = vadd.xlane.f32.xlu0 %v1262
    %v1264 = vpop.xlane.xlu0 %1263
    %v1265 = vsel %vm659, %v1247, 0.0
    %1266 = vadd.xlane.f32.xlu0 %v1265
    %v1267 = vpop.xlane.xlu0 %1266
    %v1268 = vsel %vm659, %v1248, 0.0
    %1269 = vadd.xlane.f32.xlu0 %v1268
    %v1270 = vpop.xlane.xlu0 %1269
    %v1271 = vsel %vm659, %v1249, 0.0
    %1272 = vadd.xlane.f32.xlu0 %v1271
    %v1273 = vpop.xlane.xlu0 %1272
    %1282 = vrot.lane.b32.xlu0 %v1242, 112
    %v1283 = vpop.permute.xlu0 %1282
    %1284 = vrot.lane.b32.xlu0 %v1243, 112
    %v1285 = vpop.permute.xlu0 %1284
    %1286 = vrot.lane.b32.xlu0 %v1244, 112
    %v1287 = vpop.permute.xlu0 %1286
    %1288 = vrot.lane.b32.xlu0 %v1245, 112
    %v1289 = vpop.permute.xlu0 %1288
    %1290 = vrot.lane.b32.xlu0 %v1246, 112
    %v1291 = vpop.permute.xlu0 %1290
    %1292 = vrot.lane.b32.xlu0 %v1247, 112
    %v1293 = vpop.permute.xlu0 %1292
    %1294 = vrot.lane.b32.xlu0 %v1248, 112
    %v1295 = vpop.permute.xlu0 %1294
    %1296 = vrot.lane.b32.xlu0 %v1249, 112
    %v1297 = vpop.permute.xlu0 %1296
    %v1306 = vsel %vm659, %v1283, 0.0
    %1307 = vadd.xlane.f32.xlu0 %v1306
    %v1308 = vpop.xlane.xlu0 %1307
    %v1309 = vsel %vm659, %v1285, 0.0
    %1310 = vadd.xlane.f32.xlu0 %v1309
    %v1311 = vpop.xlane.xlu0 %1310
    %v1312 = vsel %vm659, %v1287, 0.0
    %1313 = vadd.xlane.f32.xlu0 %v1312
    %v1314 = vpop.xlane.xlu0 %1313
    %v1315 = vsel %vm659, %v1289, 0.0
    %1316 = vadd.xlane.f32.xlu0 %v1315
    %v1317 = vpop.xlane.xlu0 %1316
    %v1318 = vsel %vm659, %v1291, 0.0
    %1319 = vadd.xlane.f32.xlu0 %v1318
    %v1320 = vpop.xlane.xlu0 %1319
    %v1321 = vsel %vm659, %v1293, 0.0
    %1322 = vadd.xlane.f32.xlu0 %v1321
    %v1323 = vpop.xlane.xlu0 %1322
    %v1324 = vsel %vm659, %v1295, 0.0
    %1325 = vadd.xlane.f32.xlu0 %v1324
    %v1326 = vpop.xlane.xlu0 %1325
    %v1327 = vsel %vm659, %v1297, 0.0
    %1328 = vadd.xlane.f32.xlu0 %v1327
    %v1329 = vpop.xlane.xlu0 %1328
    %1330 = vrot.lane.b32.xlu0 %v1242, 96
    %v1331 = vpop.permute.xlu0 %1330
    %1332 = vrot.lane.b32.xlu0 %v1243, 96
    %v1333 = vpop.permute.xlu0 %1332
    %1334 = vrot.lane.b32.xlu0 %v1244, 96
    %v1335 = vpop.permute.xlu0 %1334
    %1336 = vrot.lane.b32.xlu0 %v1245, 96
    %v1337 = vpop.permute.xlu0 %1336
    %1338 = vrot.lane.b32.xlu0 %v1246, 96
    %v1339 = vpop.permute.xlu0 %1338
    %1340 = vrot.lane.b32.xlu0 %v1247, 96
    %v1341 = vpop.permute.xlu0 %1340
    %1342 = vrot.lane.b32.xlu0 %v1248, 96
    %v1343 = vpop.permute.xlu0 %1342
    %1344 = vrot.lane.b32.xlu0 %v1249, 96
    %v1345 = vpop.permute.xlu0 %1344
    %v1354 = vsel %vm659, %v1331, 0.0
    %1355 = vadd.xlane.f32.xlu0 %v1354
    %v1356 = vpop.xlane.xlu0 %1355
    %v1357 = vsel %vm659, %v1333, 0.0
    %1358 = vadd.xlane.f32.xlu0 %v1357
    %v1359 = vpop.xlane.xlu0 %1358
    %v1360 = vsel %vm659, %v1335, 0.0
    %1361 = vadd.xlane.f32.xlu0 %v1360
    %v1362 = vpop.xlane.xlu0 %1361
    %v1363 = vsel %vm659, %v1337, 0.0
    %1364 = vadd.xlane.f32.xlu0 %v1363
    %v1365 = vpop.xlane.xlu0 %1364
    %v1366 = vsel %vm659, %v1339, 0.0
    %1367 = vadd.xlane.f32.xlu0 %v1366
    %v1368 = vpop.xlane.xlu0 %1367
    %v1369 = vsel %vm659, %v1341, 0.0
    %1370 = vadd.xlane.f32.xlu0 %v1369
    %v1371 = vpop.xlane.xlu0 %1370
    %v1372 = vsel %vm659, %v1343, 0.0
    %1373 = vadd.xlane.f32.xlu0 %v1372
    %v1374 = vpop.xlane.xlu0 %1373
    %v1375 = vsel %vm659, %v1345, 0.0
    %1376 = vadd.xlane.f32.xlu0 %v1375
    %v1377 = vpop.xlane.xlu0 %1376
    %1378 = vrot.lane.b32.xlu0 %v1242, 80
    %v1379 = vpop.permute.xlu0 %1378
    %1380 = vrot.lane.b32.xlu0 %v1243, 80
    %v1381 = vpop.permute.xlu0 %1380
    %1382 = vrot.lane.b32.xlu0 %v1244, 80
    %v1383 = vpop.permute.xlu0 %1382
    %1384 = vrot.lane.b32.xlu0 %v1245, 80
    %v1385 = vpop.permute.xlu0 %1384
    %1386 = vrot.lane.b32.xlu0 %v1246, 80
    %v1387 = vpop.permute.xlu0 %1386
    %1388 = vrot.lane.b32.xlu0 %v1247, 80
    %v1389 = vpop.permute.xlu0 %1388
    %1390 = vrot.lane.b32.xlu0 %v1248, 80
    %v1391 = vpop.permute.xlu0 %1390
    %1392 = vrot.lane.b32.xlu0 %v1249, 80
    %v1393 = vpop.permute.xlu0 %1392
    %v1402 = vsel %vm659, %v1379, 0.0
    %1403 = vadd.xlane.f32.xlu0 %v1402
    %v1404 = vpop.xlane.xlu0 %1403
    %v1405 = vsel %vm659, %v1381, 0.0
    %1406 = vadd.xlane.f32.xlu0 %v1405
    %v1407 = vpop.xlane.xlu0 %1406
    %v1408 = vsel %vm659, %v1383, 0.0
    %1409 = vadd.xlane.f32.xlu0 %v1408
    %v1410 = vpop.xlane.xlu0 %1409
    %v1411 = vsel %vm659, %v1385, 0.0
    %1412 = vadd.xlane.f32.xlu0 %v1411
    %v1413 = vpop.xlane.xlu0 %1412
    %v1414 = vsel %vm659, %v1387, 0.0
    %1415 = vadd.xlane.f32.xlu0 %v1414
    %v1416 = vpop.xlane.xlu0 %1415
    %v1417 = vsel %vm659, %v1389, 0.0
    %1418 = vadd.xlane.f32.xlu0 %v1417
    %v1419 = vpop.xlane.xlu0 %1418
    %v1420 = vsel %vm659, %v1391, 0.0
    %1421 = vadd.xlane.f32.xlu0 %v1420
    %v1422 = vpop.xlane.xlu0 %1421
    %v1423 = vsel %vm659, %v1393, 0.0
    %1424 = vadd.xlane.f32.xlu0 %v1423
    %v1425 = vpop.xlane.xlu0 %1424
    %v1426 = vsel %vm682, %v1252, %v1308
    %v1427 = vsel %vm682, %v1255, %v1311
    %v1428 = vsel %vm682, %v1258, %v1314
    %v1429 = vsel %vm682, %v1261, %v1317
    %v1430 = vsel %vm682, %v1264, %v1320
    %v1431 = vsel %vm682, %v1267, %v1323
    %v1432 = vsel %vm682, %v1270, %v1326
    %v1433 = vsel %vm682, %v1273, %v1329
    %v1434 = vsel %vm684, %v1426, %v1356
    %v1435 = vsel %vm684, %v1427, %v1359
    %v1436 = vsel %vm684, %v1428, %v1362
    %v1437 = vsel %vm684, %v1429, %v1365
    %v1438 = vsel %vm684, %v1430, %v1368
    %v1439 = vsel %vm684, %v1431, %v1371
    %v1440 = vsel %vm684, %v1432, %v1374
    %v1441 = vsel %vm684, %v1433, %v1377
    %v1442 = vsel %vm686, %v1434, %v1404
    %v1443 = vsel %vm686, %v1435, %v1407
    %v1444 = vsel %vm686, %v1436, %v1410
    %v1445 = vsel %vm686, %v1437, %v1413
    %v1446 = vsel %vm686, %v1438, %v1416
    %v1447 = vsel %vm686, %v1439, %v1419
    %v1448 = vsel %vm686, %v1440, %v1422
    %v1449 = vsel %vm686, %v1441, %v1425
    %v1450 = vadd.f32 %v930, %v1442
    %v1451 = vadd.f32 %v931, %v1443
    %v1452 = vadd.f32 %v932, %v1444
    %v1453 = vadd.f32 %v933, %v1445
    %v1454 = vadd.f32 %v934, %v1446
    %v1455 = vadd.f32 %v935, %v1447
    %v1456 = vadd.f32 %v936, %v1448
    %v1457 = vadd.f32 %v937, %v1449
    %v1458 = vsel %vm938, %v1450, -inf
    %v1459 = vsel %vm938, %v1451, -inf
    %v1460 = vsel %vm938, %v1452, -inf
    %v1461 = vsel %vm938, %v1453, -inf
    %v1462 = vsel %vm938, %v1454, -inf
    %v1463 = vmax.f32 %v1458, %v1462
    %v1464 = vsel %vm938, %v1455, -inf
    %v1465 = vmax.f32 %v1459, %v1464
    %v1466 = vsel %vm938, %v1456, -inf
    %v1467 = vmax.f32 %v1460, %v1466
    %v1468 = vsel %vm938, %v1457, -inf
    %v1469 = vmax.f32 %v1461, %v1468
    %v1470 = vmax.f32 %v1463, %v1465
    %v1471 = vmax.f32 %v1467, %v1469
    %v1472 = vmax.f32 %v1470, %v1471
    %v1473 = vsub.f32 %v1450, %v1472
    %v1474 = vsub.f32 %v1451, %v1472
    %v1475 = vsub.f32 %v1452, %v1472
    %v1476 = vsub.f32 %v1453, %v1472
    %v1477 = vsub.f32 %v1454, %v1472
    %v1478 = vsub.f32 %v1455, %v1472
    %v1479 = vsub.f32 %v1456, %v1472
    %v1480 = vsub.f32 %v1457, %v1472
    %v1481 = vmul.f32 %v1473, 1.442695
    %v1482 = vpow.pop %v1481
    %v1483 = vmul.f32 %v1474, 1.442695
    %v1484 = vpow.pop %v1483
    %v1485 = vmul.f32 %v1475, 1.442695
    %v1486 = vpow.pop %v1485
    %v1487 = vmul.f32 %v1476, 1.442695
    %v1488 = vpow.pop %v1487
    %v1489 = vmul.f32 %v1477, 1.442695
    %v1490 = vpow.pop %v1489
    %v1491 = vmul.f32 %v1478, 1.442695
    %v1492 = vpow.pop %v1491
    %v1493 = vmul.f32 %v1479, 1.442695
    %v1494 = vpow.pop %v1493
    %v1495 = vmul.f32 %v1480, 1.442695
    %v1496 = vpow.pop %v1495
    %v1497 = vsel %vm938, %v1482, 0.0
    %v1498 = vsel %vm938, %v1484, 0.0
    %v1499 = vadd.f32 %v1497, %v1498
    %v1500 = vsel %vm938, %v1486, 0.0
    %v1501 = vadd.f32 %v1499, %v1500
    %v1502 = vsel %vm938, %v1488, 0.0
    %v1503 = vadd.f32 %v1501, %v1502
    %v1504 = vsel %vm938, %v1490, 0.0
    %v1505 = vadd.f32 %v1503, %v1504
    %v1506 = vsel %vm938, %v1492, 0.0
    %v1507 = vadd.f32 %v1505, %v1506
    %v1508 = vsel %vm938, %v1494, 0.0
    %v1509 = vadd.f32 %v1507, %v1508
    %v1510 = vsel %vm938, %v1496, 0.0
    %v1511 = vadd.f32 %v1509, %v1510
    %v1512 = vrcp.pop %v1511
    %v1513 = vmul.f32 %v1482, %v1512
    %v1514 = vmul.f32 %v1484, %v1512
    %v1515 = vmul.f32 %v1486, %v1512
    %v1516 = vmul.f32 %v1488, %v1512
    %v1517 = vmul.f32 %v1490, %v1512
    %v1518 = vmul.f32 %v1492, %v1512
    %v1519 = vmul.f32 %v1494, %v1512
    %v1520 = vmul.f32 %v1496, %v1512
    %1522 = vset.pattern.permute.xlu0 0
    %1523 = vperm.xlu0 %1522, %v1513
    %v1524 = vpop.permute.xlu0 %1523
    %1527 = vset.pattern.permute.xlu0 0
    %1528 = vperm.xlu0 %1527, %v1514
    %v1529 = vpop.permute.xlu0 %1528
    %1532 = vset.pattern.permute.xlu0 0
    %1533 = vperm.xlu0 %1532, %v1515
    %v1534 = vpop.permute.xlu0 %1533
    %1537 = vset.pattern.permute.xlu0 0
    %1538 = vperm.xlu0 %1537, %v1516
    %v1539 = vpop.permute.xlu0 %1538
    %1542 = vset.pattern.permute.xlu0 0
    %1543 = vperm.xlu0 %1542, %v1517
    %v1544 = vpop.permute.xlu0 %1543
    %1547 = vset.pattern.permute.xlu0 0
    %1548 = vperm.xlu0 %1547, %v1518
    %v1549 = vpop.permute.xlu0 %1548
    %1552 = vset.pattern.permute.xlu0 0
    %1553 = vperm.xlu0 %1552, %v1519
    %v1554 = vpop.permute.xlu0 %1553
    %1557 = vset.pattern.permute.xlu0 0
    %1558 = vperm.xlu0 %1557, %v1520
    %v1559 = vpop.permute.xlu0 %1558
    %1561 = vset.pattern.permute.xlu0 1
    %1562 = vperm.xlu0 %1561, %v1513
    %v1563 = vpop.permute.xlu0 %1562
    %1565 = vset.pattern.permute.xlu0 1
    %1566 = vperm.xlu0 %1565, %v1514
    %v1567 = vpop.permute.xlu0 %1566
    %1569 = vset.pattern.permute.xlu0 1
    %1570 = vperm.xlu0 %1569, %v1515
    %v1571 = vpop.permute.xlu0 %1570
    %1573 = vset.pattern.permute.xlu0 1
    %1574 = vperm.xlu0 %1573, %v1516
    %v1575 = vpop.permute.xlu0 %1574
    %1577 = vset.pattern.permute.xlu0 1
    %1578 = vperm.xlu0 %1577, %v1517
    %v1579 = vpop.permute.xlu0 %1578
    %1581 = vset.pattern.permute.xlu0 1
    %1582 = vperm.xlu0 %1581, %v1518
    %v1583 = vpop.permute.xlu0 %1582
    %1585 = vset.pattern.permute.xlu0 1
    %1586 = vperm.xlu0 %1585, %v1519
    %v1587 = vpop.permute.xlu0 %1586
    %1589 = vset.pattern.permute.xlu0 1
    %1590 = vperm.xlu0 %1589, %v1520
    %v1591 = vpop.permute.xlu0 %1590
    %1593 = vset.pattern.permute.xlu0 2
    %1594 = vperm.xlu0 %1593, %v1513
    %v1595 = vpop.permute.xlu0 %1594
    %1597 = vset.pattern.permute.xlu0 2
    %1598 = vperm.xlu0 %1597, %v1514
    %v1599 = vpop.permute.xlu0 %1598
    %1601 = vset.pattern.permute.xlu0 2
    %1602 = vperm.xlu0 %1601, %v1515
    %v1603 = vpop.permute.xlu0 %1602
    %1605 = vset.pattern.permute.xlu0 2
    %1606 = vperm.xlu0 %1605, %v1516
    %v1607 = vpop.permute.xlu0 %1606
    %1609 = vset.pattern.permute.xlu0 2
    %1610 = vperm.xlu0 %1609, %v1517
    %v1611 = vpop.permute.xlu0 %1610
    %1613 = vset.pattern.permute.xlu0 2
    %1614 = vperm.xlu0 %1613, %v1518
    %v1615 = vpop.permute.xlu0 %1614
    %1617 = vset.pattern.permute.xlu0 2
    %1618 = vperm.xlu0 %1617, %v1519
    %v1619 = vpop.permute.xlu0 %1618
    %1621 = vset.pattern.permute.xlu0 2
    %1622 = vperm.xlu0 %1621, %v1520
    %v1623 = vpop.permute.xlu0 %1622
    %1625 = vset.pattern.permute.xlu0 3
    %1626 = vperm.xlu0 %1625, %v1513
    %v1627 = vpop.permute.xlu0 %1626
    %1629 = vset.pattern.permute.xlu0 3
    %1630 = vperm.xlu0 %1629, %v1514
    %v1631 = vpop.permute.xlu0 %1630
    %1633 = vset.pattern.permute.xlu0 3
    %1634 = vperm.xlu0 %1633, %v1515
    %v1635 = vpop.permute.xlu0 %1634
    %1637 = vset.pattern.permute.xlu0 3
    %1638 = vperm.xlu0 %1637, %v1516
    %v1639 = vpop.permute.xlu0 %1638
    %1641 = vset.pattern.permute.xlu0 3
    %1642 = vperm.xlu0 %1641, %v1517
    %v1643 = vpop.permute.xlu0 %1642
    %1645 = vset.pattern.permute.xlu0 3
    %1646 = vperm.xlu0 %1645, %v1518
    %v1647 = vpop.permute.xlu0 %1646
    %1649 = vset.pattern.permute.xlu0 3
    %1650 = vperm.xlu0 %1649, %v1519
    %v1651 = vpop.permute.xlu0 %1650
    %1653 = vset.pattern.permute.xlu0 3
    %1654 = vperm.xlu0 %1653, %v1520
    %v1655 = vpop.permute.xlu0 %1654
    %v1657 = vsel %vm715, %v1524, %v1563
    %v1658 = vsel %vm715, %v1529, %v1567
    %v1659 = vsel %vm715, %v1534, %v1571
    %v1660 = vsel %vm715, %v1539, %v1575
    %v1661 = vsel %vm715, %v1544, %v1579
    %v1662 = vsel %vm715, %v1549, %v1583
    %v1663 = vsel %vm715, %v1554, %v1587
    %v1664 = vsel %vm715, %v1559, %v1591
    %v1665 = vsel %vm717, %v1657, %v1595
    %v1666 = vsel %vm717, %v1658, %v1599
    %v1667 = vsel %vm717, %v1659, %v1603
    %v1668 = vsel %vm717, %v1660, %v1607
    %v1669 = vsel %vm717, %v1661, %v1611
    %v1670 = vsel %vm717, %v1662, %v1615
    %v1671 = vsel %vm717, %v1663, %v1619
    %v1672 = vsel %vm717, %v1664, %v1623
    %v1673 = vsel %vm719, %v1665, %v1627
    %v1674 = vsel %vm719, %v1666, %v1631
    %v1675 = vsel %vm719, %v1667, %v1635
    %v1676 = vsel %vm719, %v1668, %v1639
    %v1677 = vsel %vm719, %v1669, %v1643
    %v1678 = vsel %vm719, %v1670, %v1647
    %v1679 = vsel %vm719, %v1671, %v1651
    %v1680 = vsel %vm719, %v1672, %v1655
    %v1681 = vmul.f32 %v1673, %v127
    %v1682 = vmul.f32 %v1674, %v200
    %v1683 = vmul.f32 %v1675, %v273
    %v1684 = vmul.f32 %v1676, %v346
    %v1685 = vmul.f32 %v1677, %v419
    %v1686 = vmul.f32 %v1678, %v492
    %v1687 = vmul.f32 %v1679, %v565
    %v1688 = vmul.f32 %v1680, %v638
    %v1689 = vsel %vm641, %v1681, 0.0
    %v1690 = vsel %vm641, %v1682, 0.0
    %v1691 = vadd.f32 %v1689, %v1690
    %v1692 = vsel %vm641, %v1683, 0.0
    %v1693 = vadd.f32 %v1691, %v1692
    %v1694 = vsel %vm641, %v1684, 0.0
    %v1695 = vadd.f32 %v1693, %v1694
    %v1696 = vsel %vm641, %v1685, 0.0
    %v1697 = vadd.f32 %v1695, %v1696
    %v1698 = vsel %vm641, %v1686, 0.0
    %v1699 = vadd.f32 %v1697, %v1698
    %v1700 = vsel %vm641, %v1687, 0.0
    %v1701 = vadd.f32 %v1699, %v1700
    %v1702 = vsel %vm641, %v1688, 0.0
    %v1703 = vadd.f32 %v1701, %v1702
    %v1704 = vmul.f32 %v1703, %v1703
    %v1705 = vsel %vm659, %v1704, 0.0
    %1706 = vadd.xlane.f32.xlu0 %v1705
    %v1707 = vpop.xlane.xlu0 %1706
    %1709 = vrot.lane.b32.xlu0 %v1704, 112
    %v1710 = vpop.permute.xlu0 %1709
    %v1712 = vsel %vm659, %v1710, 0.0
    %1713 = vadd.xlane.f32.xlu0 %v1712
    %v1714 = vpop.xlane.xlu0 %1713
    %1715 = vrot.lane.b32.xlu0 %v1704, 96
    %v1716 = vpop.permute.xlu0 %1715
    %v1718 = vsel %vm659, %v1716, 0.0
    %1719 = vadd.xlane.f32.xlu0 %v1718
    %v1720 = vpop.xlane.xlu0 %1719
    %1721 = vrot.lane.b32.xlu0 %v1704, 80
    %v1722 = vpop.permute.xlu0 %1721
    %v1724 = vsel %vm659, %v1722, 0.0
    %1725 = vadd.xlane.f32.xlu0 %v1724
    %v1726 = vpop.xlane.xlu0 %1725
    %v1727 = vsel %vm682, %v1707, %v1714
    %v1728 = vsel %vm684, %v1727, %v1720
    %v1729 = vsel %vm686, %v1728, %v1726
    %v1730 = vrsqrt.pop %v1729
    %v1731 = vmul.f32 %v1729, %v1730
    %vm1732 = vcmp.eq.f32.partialorder %v1729, inf
    %v1733 = vsel %vm1732, %v1729, %v1731
    %vm1734 = vcmp.eq.f32.partialorder %v1729, 0.0
    %v1735 = vand.u32 %v1729, 2147483648
    %v1736 = vsel %vm1734, %v1735, %v1733
    %v1737 = vadd.f32 %v1729, 1.0
    %v1738 = vrcp.pop %v1737
    %v1739 = vmul.f32 %v1736, %v1738
    %1741 = vset.pattern.permute.xlu0 0
    %1742 = vperm.xlu0 %1741, %v1739
    %v1743 = vpop.permute.xlu0 %1742
    %1745 = vset.pattern.permute.xlu0 1
    %1746 = vperm.xlu0 %1745, %v1739
    %v1747 = vpop.permute.xlu0 %1746
    %1749 = vset.pattern.permute.xlu0 2
    %1750 = vperm.xlu0 %1749, %v1739
    %v1751 = vpop.permute.xlu0 %1750
    %1753 = vset.pattern.permute.xlu0 3
    %1754 = vperm.xlu0 %1753, %v1739
    %v1755 = vpop.permute.xlu0 %1754
    %v1757 = vsel %vm715, %v1743, %v1747
    %v1758 = vsel %vm717, %v1757, %v1751
    %v1759 = vsel %vm719, %v1758, %v1755
    %v1760 = vmul.f32 %v1703, %v1759
    %1761 = vst.msk [vmem:[#allocation7] sm:$0x3] %vm641, %v1760
    // Predicated region
    $region18: #{tpu_custom_call.1} parent=1 // pred_check
      _
    $region19: #{tpu_custom_call.1} parent=1 // pred_check_branch
      %1763 = sbr.rel (0) target = $region21
    $region20: #{tpu_custom_call.1} parent=1 // pred_region
      %s1765 = ssub.s32 32, 32
      %1766 = vsyncadd [#allocation4], %s1765
      %s1768 = sshll.u32 [#allocation7], 4
      %s1769 = int_to_ptr.vmem [resolvable:$true] %s1768
      %1771 = dma.vmem_to_hbm [thread:$0]  %s1769, 32, %s2, [#allocation4]
    $region21: #{tpu_custom_call.1} parent=1 // pred_fallthru
      _
    // Predicated region
    $region22: #{tpu_custom_call.1} parent=1 // pred_check
      _
    $region23: #{tpu_custom_call.1} parent=1 // pred_check_branch
      %1773 = sbr.rel (0) target = $region25
    $region24: #{tpu_custom_call.1} parent=1 // pred_region
      %1774 = dma.done [#allocation4], 32
    $region25: #{tpu_custom_call.1} parent=1 // pred_fallthru
      _
    %1775 = vsyncpa [#allocation3], 1
    %1776 = vsyncpa [#allocation6], 1
    %1777 = vsyncpa [#allocation4], 1

</llo_original>
